<compile_context>
chip_gen: v6e
topology: v6e:2x2x1
jax: 0.10.0
libtpu: 0.0.40
codegen_flags: <defaults>
</compile_context>

<pallas_src>
import math

import jax
import jax.numpy as jnp
from jax.experimental import pallas as pl
from jax.experimental.pallas import tpu as pltpu


# ----------------------------- in-kernel helpers -----------------------------

def _layer_norm(x, w, b, eps=1e-5):
    # torch.nn.LayerNorm over the last dim (biased variance, eps=1e-5).
    mu = jnp.mean(x, axis=-1, keepdims=True)
    xc = x - mu
    var = jnp.mean(xc * xc, axis=-1, keepdims=True)
    return xc * jax.lax.rsqrt(var + eps) * w + b


def _gelu_exact(x):
    # torch.nn.GELU default (exact, erf based).
    return 0.5 * x * (1.0 + jax.lax.erf(x * (1.0 / math.sqrt(2.0))))


# ------------------------------- Pallas kernels -------------------------------

def qkv_kernel(xq_ref, xk_ref, xv_ref,
               ln1_w, ln1_b, ln1v_w, ln1v_b,
               wq_t, wk_t, wv_t,
               q_ref, k_ref, v_ref):
    # refs are (row_tile, dim): (B, L) flattened into one big row axis.
    # LayerNorm in f32, matmul inputs in bf16, f32 accumulation, bf16 outputs.
    xq_n = _layer_norm(xq_ref[...], ln1_w[0], ln1_b[0]).astype(jnp.bfloat16)
    xk_n = _layer_norm(xk_ref[...], ln1_w[0], ln1_b[0]).astype(jnp.bfloat16)   # same norm1!
    xv_n = _layer_norm(xv_ref[...], ln1v_w[0], ln1v_b[0]).astype(jnp.bfloat16)
    q_ref[...] = jnp.dot(xq_n, wq_t[...],
                         preferred_element_type=jnp.float32).astype(q_ref.dtype)
    k_ref[...] = jnp.dot(xk_n, wk_t[...],
                         preferred_element_type=jnp.float32).astype(k_ref.dtype)
    v_ref[...] = jnp.dot(xv_n, wv_t[...],
                         preferred_element_type=jnp.float32).astype(v_ref.dtype)


def attn_mlp_kernel(q_ref, k_ref, v_ref, xv_ref,
                    wp3_ref, bp_ref, ln2_w, ln2_b, ln3_w, ln3_b,
                    wfc1_ref, bfc1_ref, wfc2_ref, bfc2_ref,
                    o_ref,
                    m_sc, l_sc, acc_sc):
    # grid = (batch, Lq tiles [parallel], Lk tiles [arbitrary reduction]).
    # q_ref (H, tq, hd_kq) bf16 (scale already folded into wq), k/v (H, tk, hd) bf16,
    # xv_ref (tq, dim_v) f32, scratch accumulators persist across the Lk axis.
    ki = pl.program_id(2)

    @pl.when(ki == 0)
    def _():
        m_sc[...] = jnp.full(m_sc.shape, -jnp.inf, dtype=m_sc.dtype)
        l_sc[...] = jnp.zeros(l_sc.shape, dtype=l_sc.dtype)
        acc_sc[...] = jnp.zeros(acc_sc.shape, dtype=acc_sc.dtype)

    # ---- online-softmax attention over this Lk tile, all heads at once ----
    s = jnp.einsum('hqd,hkd->hqk', q_ref[...], k_ref[...],
                   preferred_element_type=jnp.float32)              # (H, tq, tk)
    m_new = jnp.maximum(m_sc[...], jnp.max(s, axis=-1, keepdims=True))
    alpha = jnp.exp(m_sc[...] - m_new)
    p = jnp.exp(s - m_new)
    l_sc[...] = alpha * l_sc[...] + jnp.sum(p, axis=-1, keepdims=True)
    acc_sc[...] = alpha * acc_sc[...] + jnp.einsum(
        'hqk,hkd->hqd', p.astype(jnp.bfloat16), v_ref[...],
        preferred_element_type=jnp.float32)                         # (H, tq, hd_v)
    m_sc[...] = m_new

    # ---- finalize on the last Lk step: proj + residual + MLP + norms ----
    @pl.when(ki == pl.num_programs(2) - 1)
    def _():
        ctx = (acc_sc[...] * pl.reciprocal(l_sc[...], approx=True)
               ).astype(jnp.bfloat16)                               # (H, tq, hd_v)
        # head merge + attn.proj: one batched matmul then a single head reduction
        # (equivalent to transpose(1,2).reshape @ Wp^T, no in-kernel transpose).
        # TODO(synk): a single dim_v-deep contraction would fill the MXU better but
        # needs a multi-contracting-dim dot_general / ctx relayout.
        per_head = jax.lax.dot_general(
            ctx, wp3_ref[...],
            dimension_numbers=(((2,), (1,)), ((0,), (0,))),
            preferred_element_type=jnp.float32)                     # (H, tq, dim_v)
        attn_out = jnp.sum(per_head, axis=0) + bp_ref[0]

        x1 = xv_ref[...] + attn_out
        x1_n = _layer_norm(x1, ln2_w[0], ln2_b[0]).astype(jnp.bfloat16)
        h1 = jnp.dot(x1_n, wfc1_ref[...],
                     preferred_element_type=jnp.float32) + bfc1_ref[0]
        h1 = _gelu_exact(h1).astype(jnp.bfloat16)
        mlp_out = jnp.dot(h1, wfc2_ref[...],
                          preferred_element_type=jnp.float32) + bfc2_ref[0]
        o_ref[...] = _layer_norm(x1 + mlp_out, ln3_w[0], ln3_b[0]).astype(o_ref.dtype)


# --------------------------------- wrapper ------------------------------------

def _row_tile(n_rows, max_tile=512):
    # biggest sublane-aligned row tile; awkward n_rows are handled by padding the
    # row axis up to a multiple of the tile in the wrapper (no giant single tile).
    if n_rows >= max_tile:
        for t in range(max_tile, 7, -8):
            if n_rows % t == 0:
                return t
        return max_tile                       # wrapper pads up to a multiple
    return ((n_rows + 7) // 8) * 8            # small case: one padded aligned tile


def _seq_tile(length, max_tile):
    if length <= max_tile:
        return length
    for t in range(max_tile, 7, -8):
        if length % t == 0:
            return t
    # TODO(synk): pad + mask the key axis for lengths with no aligned divisor.
    return length


def _flatten_rows(x, n_rows, n_pad):
    x2 = x.reshape(n_rows, x.shape[-1])
    if n_pad != n_rows:
        x2 = jnp.pad(x2, ((0, n_pad - n_rows), (0, 0)))
    return x2


def prepare_block_params(params, *, num_heads):
    """Parameter-prep: fold the 1/sqrt(hd) q-scale into wq, cast all matmul weights
    to bf16 (MXU-native), and pre-split the proj weight per head. LayerNorm affines
    and biases stay f32 (VPU epilogue)."""
    dim_kq = params["wq_t"].shape[0]
    dim_v = params["wv_t"].shape[0]
    hd_kq = dim_kq // num_heads
    hd_v = dim_v // num_heads
    bf16 = jnp.bfloat16
    kp = {k: v for k, v in params.items() if k != "wp_t"}
    kp["wq_t"] = (params["wq_t"] * (hd_kq ** -0.5)).astype(bf16)
    kp["wk_t"] = params["wk_t"].astype(bf16)
    kp["wv_t"] = params["wv_t"].astype(bf16)
    kp["wp3"] = params["wp_t"].astype(bf16).reshape(num_heads, hd_v, dim_v)
    kp["wfc1_t"] = params["wfc1_t"].astype(bf16)
    kp["wfc2_t"] = params["wfc2_t"].astype(bf16)
    return kp


def block_forward(kp, x_q, x_k, x_v, *, num_heads,
                  row_tile=512, q_tile=256, k_tile=512,
                  single_buffer_weights=True):
    B, L, dim_kq = x_q.shape
    dim_v = x_v.shape[-1]
    hd_kq = dim_kq // num_heads
    hd_v = dim_v // num_heads
    hidden = kp["wfc1_t"].shape[1]
    f32, bf16 = jnp.float32, jnp.bfloat16

    # Above the 16/32 MiB default scoped limits, safely below v7x's 64 MiB physical.
    vmem_cap = 48 * 1024 * 1024

    # ---- kernel A: pre-norms + q/k/v projections over flattened (B*L) rows ----
    n_rows = B * L
    rt = _row_tile(n_rows, max_tile=row_tile)
    n_pad = pl.cdiv(n_rows, rt) * rt

    def row_spec(d):
        return pl.BlockSpec((rt, d), lambda i: (i, 0))

    def const_spec_a(shape):
        idx = lambda i: (0,) * len(shape)
        if single_buffer_weights:
            return pl.BlockSpec(shape, idx, pipeline_mode=pl.Buffered(1))
        return pl.BlockSpec(shape, idx)

    q2, k2, v2 = pl.pallas_call(
        qkv_kernel,
        out_shape=(jax.ShapeDtypeStruct((n_pad, dim_kq), bf16),
                   jax.ShapeDtypeStruct((n_pad, dim_kq), bf16),
                   jax.ShapeDtypeStruct((n_pad, dim_v), bf16)),
        grid=(n_pad // rt,),
        in_specs=[row_spec(dim_kq), row_spec(dim_kq), row_spec(dim_v),
                  const_spec_a((1, dim_kq)), const_spec_a((1, dim_kq)),
                  const_spec_a((1, dim_v)), const_spec_a((1, dim_v)),
                  const_spec_a((dim_kq, dim_kq)), const_spec_a((dim_kq, dim_kq)),
                  const_spec_a((dim_v, dim_v))],
        out_specs=(row_spec(dim_kq), row_spec(dim_kq), row_spec(dim_v)),
        compiler_params=pltpu.CompilerParams(
            dimension_semantics=("parallel",),
            vmem_limit_bytes=vmem_cap),
    )(_flatten_rows(x_q, n_rows, n_pad), _flatten_rows(x_k, n_rows, n_pad),
      _flatten_rows(x_v, n_rows, n_pad),
      kp["ln1_w"], kp["ln1_b"], kp["ln1v_w"], kp["ln1v_b"],
      kp["wq_t"], kp["wk_t"], kp["wv_t"])

    if n_pad != n_rows:
        q2, k2, v2 = q2[:n_rows], k2[:n_rows], v2[:n_rows]

    # glue: reproduce the PyTorch `.view(B, H, L, hd)` quirk (no transpose) --
    # a free row-major reinterpretation done by XLA, not inside the kernel.
    q4 = q2.reshape(B, num_heads, L, hd_kq)
    k4 = k2.reshape(B, num_heads, L, hd_kq)
    v4 = v2.reshape(B, num_heads, L, hd_v)

    # ---- kernel B: flash attention + proj + residual + MLP + residual + norms ----
    tq = _seq_tile(L, q_tile)
    tk = _seq_tile(L, k_tile)

    def const_spec_b(shape):
        idx = lambda b, qi, ki: (0,) * len(shape)
        if single_buffer_weights:
            return pl.BlockSpec(shape, idx, pipeline_mode=pl.Buffered(1))
        return pl.BlockSpec(shape, idx)

    q_spec = pl.BlockSpec((None, num_heads, tq, hd_kq), lambda b, qi, ki: (b, 0, qi, 0))
    k_spec = pl.BlockSpec((None, num_heads, tk, hd_kq), lambda b, qi, ki: (b, 0, ki, 0))
    v_spec = pl.BlockSpec((None, num_heads, tk, hd_v), lambda b, qi, ki: (b, 0, ki, 0))
    xv_spec = pl.BlockSpec((None, tq, dim_v), lambda b, qi, ki: (b, qi, 0))
    o_spec = pl.BlockSpec((None, tq, dim_v), lambda b, qi, ki: (b, qi, 0))

    out = pl.pallas_call(
        attn_mlp_kernel,
        out_shape=jax.ShapeDtypeStruct((B, L, dim_v), f32),
        grid=(B, L // tq, L // tk),
        in_specs=[q_spec, k_spec, v_spec, xv_spec,
                  const_spec_b((num_heads, hd_v, dim_v)),
                  const_spec_b((1, dim_v)),
                  const_spec_b((1, dim_v)), const_spec_b((1, dim_v)),
                  const_spec_b((1, dim_v)), const_spec_b((1, dim_v)),
                  const_spec_b((dim_v, hidden)), const_spec_b((1, hidden)),
                  const_spec_b((hidden, dim_v)), const_spec_b((1, dim_v))],
        out_specs=o_spec,
        scratch_shapes=[pltpu.VMEM((num_heads, tq, 1), f32),       # running max
                        pltpu.VMEM((num_heads, tq, 1), f32),       # running denom
                        pltpu.VMEM((num_heads, tq, hd_v), f32)],   # running context
        compiler_params=pltpu.CompilerParams(
            dimension_semantics=("parallel", "parallel", "arbitrary"),
            vmem_limit_bytes=vmem_cap),
    )(q4, k4, v4, x_v, kp["wp3"],
      kp["bp"], kp["ln2_w"], kp["ln2_b"], kp["ln3_w"], kp["ln3_b"],
      kp["wfc1_t"], kp["bfc1"], kp["wfc2_t"], kp["bfc2"])

    return out


# ------------------------- pure-JAX reference (for checking) -------------------------

def block_reference(params, x_q, x_k, x_v, *, num_heads):
    B, L, dim_kq = x_q.shape
    dim_v = x_v.shape[-1]
    hd_kq = dim_kq // num_heads
    hd_v = dim_v // num_heads

    def ln(x, w, b, eps=1e-5):
        mu = x.mean(-1, keepdims=True)
        var = ((x - mu) ** 2).mean(-1, keepdims=True)
        return (x - mu) / jnp.sqrt(var + eps) * w[0] + b[0]

    xq_n = ln(x_q, params["ln1_w"], params["ln1_b"])
    xk_n = ln(x_k, params["ln1_w"], params["ln1_b"])
    xv_n = ln(x_v, params["ln1v_w"], params["ln1v_b"])
    q = (xq_n @ params["wq_t"]).reshape(B, num_heads, L, hd_kq)
    k = (xk_n @ params["wk_t"]).reshape(B, num_heads, L, hd_kq)
    v = (xv_n @ params["wv_t"]).reshape(B, num_heads, L, hd_v)
    q = q * hd_kq ** -0.5
    attn = jax.nn.softmax(q @ jnp.swapaxes(k, -2, -1), axis=-1)
    x = (attn @ v).transpose(0, 2, 1, 3).reshape(B, L, dim_v)
    x = x @ params["wp_t"] + params["bp"][0]
    x1 = x_v + x
    x1_n = ln(x1, params["ln2_w"], params["ln2_b"])
    h = x1_n @ params["wfc1_t"] + params["bfc1"][0]
    h = 0.5 * h * (1.0 + jax.lax.erf(h / math.sqrt(2.0)))
    mlp = h @ params["wfc2_t"] + params["bfc2"][0]
    return ln(x1 + mlp, params["ln3_w"], params["ln3_b"])


# ------------------------------------ main ------------------------------------

if __name__ == "__main__":
    B, L = 2, 8
    dim_kq, dim_v, num_heads = 32, 32, 4
    mlp_ratio = 4.0
    hidden = int(dim_v * mlp_ratio)
    f32 = jnp.float32

    key = jax.random.PRNGKey(0)
    ks = jax.random.split(key, 24)

    def w(k, shape, scale=0.05):
        return (scale * jax.random.normal(k, shape)).astype(f32)

    # weights stored pre-transposed ("_t") so the kernel computes x @ W^T as x @ W_t
    params = {
        # LayerNorm affines (kept as (1, dim) so VMEM refs stay 2-D)
        "ln1_w": (1.0 + 0.1 * jax.random.normal(ks[0], (1, dim_kq))).astype(f32),
        "ln1_b": w(ks[1], (1, dim_kq), 0.02),
        "ln1v_w": (1.0 + 0.1 * jax.random.normal(ks[2], (1, dim_v))).astype(f32),
        "ln1v_b": w(ks[3], (1, dim_v), 0.02),
        "ln2_w": (1.0 + 0.1 * jax.random.normal(ks[4], (1, dim_v))).astype(f32),
        "ln2_b": w(ks[5], (1, dim_v), 0.02),
        "ln3_w": (1.0 + 0.1 * jax.random.normal(ks[6], (1, dim_v))).astype(f32),
        "ln3_b": w(ks[7], (1, dim_v), 0.02),
        # attention projections (q/k/v have no bias per default Block config)
        "wq_t": w(ks[8], (dim_kq, dim_kq)),
        "wk_t": w(ks[9], (dim_kq, dim_kq)),
        "wv_t": w(ks[10], (dim_v, dim_v)),
        "wp_t": w(ks[11], (dim_v, dim_v)),
        "bp": w(ks[12], (1, dim_v), 0.02),
        # MLP (timm Mlp: fc1 -> GELU -> fc2)
        "wfc1_t": w(ks[13], (dim_v, hidden)),
        "bfc1": w(ks[14], (1, hidden), 0.02),
        "wfc2_t": w(ks[15], (hidden, dim_v)),
        "bfc2": w(ks[16], (1, dim_v), 0.02),
    }

    x_q = jax.random.normal(ks[20], (B, L, dim_kq), dtype=f32)
    x_k = jax.random.normal(ks[21], (B, L, dim_kq), dtype=f32)
    x_v = jax.random.normal(ks[22], (B, L, dim_v), dtype=f32)

    kparams = prepare_block_params(params, num_heads=num_heads)

    try:
        out = block_forward(kparams, x_q, x_k, x_v, num_heads=num_heads)
        out = jax.block_until_ready(out)
    except Exception:
        # fallback if pl.Buffered(1) single-buffering is unsupported in this jax build
        out = block_forward(kparams, x_q, x_k, x_v, num_heads=num_heads,
                            single_buffer_weights=False)
        out = jax.block_until_ready(out)

    # Reference with the same bf16-quantized weights (upcast to f32), so the check
    # isolates kernel math (accumulation order, approx reciprocal, bf16 activations).
    ref_params = dict(params)
    for name in ("wq_t", "wk_t", "wv_t", "wp_t", "wfc1_t", "wfc2_t"):
        ref_params[name] = params[name].astype(jnp.bfloat16).astype(f32)
    ref = block_reference(ref_params, x_q, x_k, x_v, num_heads=num_heads)

    assert out.shape == (B, L, dim_v)
    assert jnp.allclose(out, ref, rtol=2e-2, atol=2e-2), "mismatch vs pure-JAX reference"

    print("KERNEL_OK")
</pallas_src>

<mosaic_0001>
module attributes {stable_mosaic.version = 11 : i64} {
  func.func @qkv_kernel(%arg0: i32, %arg1: memref<16x32xf32, #tpu.memory_space<vmem>>, %arg2: memref<16x32xf32, #tpu.memory_space<vmem>>, %arg3: memref<16x32xf32, #tpu.memory_space<vmem>>, %arg4: memref<1x32xf32, #tpu.memory_space<vmem>>, %arg5: memref<1x32xf32, #tpu.memory_space<vmem>>, %arg6: memref<1x32xf32, #tpu.memory_space<vmem>>, %arg7: memref<1x32xf32, #tpu.memory_space<vmem>>, %arg8: memref<32x32xbf16, #tpu.memory_space<vmem>>, %arg9: memref<32x32xbf16, #tpu.memory_space<vmem>>, %arg10: memref<32x32xbf16, #tpu.memory_space<vmem>>, %arg11: memref<16x32xbf16, #tpu.memory_space<vmem>>, %arg12: memref<16x32xbf16, #tpu.memory_space<vmem>>, %arg13: memref<16x32xbf16, #tpu.memory_space<vmem>>) attributes {dimension_semantics = [#tpu.dimension_semantics<parallel>], iteration_bounds = array<i64: 1>, scalar_prefetch = 0 : i64, scratch_operands = 0 : i64, tpu.core_type = #tpu.core_type<tc>, window_params = [{transform_indices = @transform_0, window_bounds = array<i64: 16, 32>}, {transform_indices = @transform_1, window_bounds = array<i64: 16, 32>}, {transform_indices = @transform_2, window_bounds = array<i64: 16, 32>}, {pipeline_mode = #tpu.pipeline_mode<synchronous>, transform_indices = @transform_3, window_bounds = array<i64: 1, 32>}, {pipeline_mode = #tpu.pipeline_mode<synchronous>, transform_indices = @transform_4, window_bounds = array<i64: 1, 32>}, {pipeline_mode = #tpu.pipeline_mode<synchronous>, transform_indices = @transform_5, window_bounds = array<i64: 1, 32>}, {pipeline_mode = #tpu.pipeline_mode<synchronous>, transform_indices = @transform_6, window_bounds = array<i64: 1, 32>}, {pipeline_mode = #tpu.pipeline_mode<synchronous>, transform_indices = @transform_7, window_bounds = array<i64: 32, 32>}, {pipeline_mode = #tpu.pipeline_mode<synchronous>, transform_indices = @transform_8, window_bounds = array<i64: 32, 32>}, {pipeline_mode = #tpu.pipeline_mode<synchronous>, transform_indices = @transform_9, window_bounds = array<i64: 32, 32>}, {transform_indices = @transform_10, window_bounds = array<i64: 16, 32>}, {transform_indices = @transform_11, window_bounds = array<i64: 16, 32>}, {transform_indices = @transform_12, window_bounds = array<i64: 16, 32>}]} {
    %c0 = arith.constant 0 : index
    %c0_0 = arith.constant 0 : index
    %0 = vector.load %arg1[%c0, %c0_0] : memref<16x32xf32, #tpu.memory_space<vmem>>, vector<16x32xf32>
    %c0_1 = arith.constant 0 : index
    %c0_2 = arith.constant 0 : index
    %1 = vector.load %arg4[%c0_1, %c0_2] : memref<1x32xf32, #tpu.memory_space<vmem>>, vector<1x32xf32>
    %2 = vector.shape_cast %1 : vector<1x32xf32> to vector<32xf32>
    %c0_3 = arith.constant 0 : index
    %c0_4 = arith.constant 0 : index
    %3 = vector.load %arg5[%c0_3, %c0_4] : memref<1x32xf32, #tpu.memory_space<vmem>>, vector<1x32xf32>
    %4 = vector.shape_cast %3 : vector<1x32xf32> to vector<32xf32>
    %cst = arith.constant dense<0.000000e+00> : vector<16xf32>
    %5 = vector.multi_reduction <add>, %0, %cst [1] : vector<16x32xf32> to vector<16xf32>
    %6 = vector.shape_cast %5 : vector<16xf32> to vector<16x1xf32>
    %cst_5 = arith.constant 3.200000e+01 : f32
    %7 = vector.broadcast %cst_5 : f32 to vector<16x1xf32>
    %8 = arith.divf %6, %7 : vector<16x1xf32>
    %9 = vector.broadcast %8 : vector<16x1xf32> to vector<16x32xf32>
    %10 = arith.subf %0, %9 : vector<16x32xf32>
    %11 = arith.mulf %10, %10 : vector<16x32xf32>
    %cst_6 = arith.constant dense<0.000000e+00> : vector<16xf32>
    %12 = vector.multi_reduction <add>, %11, %cst_6 [1] : vector<16x32xf32> to vector<16xf32>
    %13 = vector.shape_cast %12 : vector<16xf32> to vector<16x1xf32>
    %cst_7 = arith.constant 3.200000e+01 : f32
    %14 = vector.broadcast %cst_7 : f32 to vector<16x1xf32>
    %15 = arith.divf %13, %14 : vector<16x1xf32>
    %cst_8 = arith.constant 9.99999974E-6 : f32
    %16 = vector.broadcast %cst_8 : f32 to vector<16x1xf32>
    %17 = arith.addf %15, %16 : vector<16x1xf32>
    %18 = math.rsqrt %17 : vector<16x1xf32>
    %19 = vector.broadcast %18 : vector<16x1xf32> to vector<16x32xf32>
    %20 = arith.mulf %10, %19 : vector<16x32xf32>
    %21 = vector.shape_cast %2 : vector<32xf32> to vector<1x32xf32>
    %22 = vector.broadcast %21 : vector<1x32xf32> to vector<16x32xf32>
    %23 = arith.mulf %20, %22 : vector<16x32xf32>
    %24 = vector.shape_cast %4 : vector<32xf32> to vector<1x32xf32>
    %25 = vector.broadcast %24 : vector<1x32xf32> to vector<16x32xf32>
    %26 = arith.addf %23, %25 : vector<16x32xf32>
    %27 = arith.truncf %26 : vector<16x32xf32> to vector<16x32xbf16>
    %c0_9 = arith.constant 0 : index
    %c0_10 = arith.constant 0 : index
    %28 = vector.load %arg2[%c0_9, %c0_10] : memref<16x32xf32, #tpu.memory_space<vmem>>, vector<16x32xf32>
    %c0_11 = arith.constant 0 : index
    %c0_12 = arith.constant 0 : index
    %29 = vector.load %arg4[%c0_11, %c0_12] : memref<1x32xf32, #tpu.memory_space<vmem>>, vector<1x32xf32>
    %30 = vector.shape_cast %29 : vector<1x32xf32> to vector<32xf32>
    %c0_13 = arith.constant 0 : index
    %c0_14 = arith.constant 0 : index
    %31 = vector.load %arg5[%c0_13, %c0_14] : memref<1x32xf32, #tpu.memory_space<vmem>>, vector<1x32xf32>
    %32 = vector.shape_cast %31 : vector<1x32xf32> to vector<32xf32>
    %cst_15 = arith.constant dense<0.000000e+00> : vector<16xf32>
    %33 = vector.multi_reduction <add>, %28, %cst_15 [1] : vector<16x32xf32> to vector<16xf32>
    %34 = vector.shape_cast %33 : vector<16xf32> to vector<16x1xf32>
    %cst_16 = arith.constant 3.200000e+01 : f32
    %35 = vector.broadcast %cst_16 : f32 to vector<16x1xf32>
    %36 = arith.divf %34, %35 : vector<16x1xf32>
    %37 = vector.broadcast %36 : vector<16x1xf32> to vector<16x32xf32>
    %38 = arith.subf %28, %37 : vector<16x32xf32>
    %39 = arith.mulf %38, %38 : vector<16x32xf32>
    %cst_17 = arith.constant dense<0.000000e+00> : vector<16xf32>
    %40 = vector.multi_reduction <add>, %39, %cst_17 [1] : vector<16x32xf32> to vector<16xf32>
    %41 = vector.shape_cast %40 : vector<16xf32> to vector<16x1xf32>
    %cst_18 = arith.constant 3.200000e+01 : f32
    %42 = vector.broadcast %cst_18 : f32 to vector<16x1xf32>
    %43 = arith.divf %41, %42 : vector<16x1xf32>
    %cst_19 = arith.constant 9.99999974E-6 : f32
    %44 = vector.broadcast %cst_19 : f32 to vector<16x1xf32>
    %45 = arith.addf %43, %44 : vector<16x1xf32>
    %46 = math.rsqrt %45 : vector<16x1xf32>
    %47 = vector.broadcast %46 : vector<16x1xf32> to vector<16x32xf32>
    %48 = arith.mulf %38, %47 : vector<16x32xf32>
    %49 = vector.shape_cast %30 : vector<32xf32> to vector<1x32xf32>
    %50 = vector.broadcast %49 : vector<1x32xf32> to vector<16x32xf32>
    %51 = arith.mulf %48, %50 : vector<16x32xf32>
    %52 = vector.shape_cast %32 : vector<32xf32> to vector<1x32xf32>
    %53 = vector.broadcast %52 : vector<1x32xf32> to vector<16x32xf32>
    %54 = arith.addf %51, %53 : vector<16x32xf32>
    %55 = arith.truncf %54 : vector<16x32xf32> to vector<16x32xbf16>
    %c0_20 = arith.constant 0 : index
    %c0_21 = arith.constant 0 : index
    %56 = vector.load %arg3[%c0_20, %c0_21] : memref<16x32xf32, #tpu.memory_space<vmem>>, vector<16x32xf32>
    %c0_22 = arith.constant 0 : index
    %c0_23 = arith.constant 0 : index
    %57 = vector.load %arg6[%c0_22, %c0_23] : memref<1x32xf32, #tpu.memory_space<vmem>>, vector<1x32xf32>
    %58 = vector.shape_cast %57 : vector<1x32xf32> to vector<32xf32>
    %c0_24 = arith.constant 0 : index
    %c0_25 = arith.constant 0 : index
    %59 = vector.load %arg7[%c0_24, %c0_25] : memref<1x32xf32, #tpu.memory_space<vmem>>, vector<1x32xf32>
    %60 = vector.shape_cast %59 : vector<1x32xf32> to vector<32xf32>
    %cst_26 = arith.constant dense<0.000000e+00> : vector<16xf32>
    %61 = vector.multi_reduction <add>, %56, %cst_26 [1] : vector<16x32xf32> to vector<16xf32>
    %62 = vector.shape_cast %61 : vector<16xf32> to vector<16x1xf32>
    %cst_27 = arith.constant 3.200000e+01 : f32
    %63 = vector.broadcast %cst_27 : f32 to vector<16x1xf32>
    %64 = arith.divf %62, %63 : vector<16x1xf32>
    %65 = vector.broadcast %64 : vector<16x1xf32> to vector<16x32xf32>
    %66 = arith.subf %56, %65 : vector<16x32xf32>
    %67 = arith.mulf %66, %66 : vector<16x32xf32>
    %cst_28 = arith.constant dense<0.000000e+00> : vector<16xf32>
    %68 = vector.multi_reduction <add>, %67, %cst_28 [1] : vector<16x32xf32> to vector<16xf32>
    %69 = vector.shape_cast %68 : vector<16xf32> to vector<16x1xf32>
    %cst_29 = arith.constant 3.200000e+01 : f32
    %70 = vector.broadcast %cst_29 : f32 to vector<16x1xf32>
    %71 = arith.divf %69, %70 : vector<16x1xf32>
    %cst_30 = arith.constant 9.99999974E-6 : f32
    %72 = vector.broadcast %cst_30 : f32 to vector<16x1xf32>
    %73 = arith.addf %71, %72 : vector<16x1xf32>
    %74 = math.rsqrt %73 : vector<16x1xf32>
    %75 = vector.broadcast %74 : vector<16x1xf32> to vector<16x32xf32>
    %76 = arith.mulf %66, %75 : vector<16x32xf32>
    %77 = vector.shape_cast %58 : vector<32xf32> to vector<1x32xf32>
    %78 = vector.broadcast %77 : vector<1x32xf32> to vector<16x32xf32>
    %79 = arith.mulf %76, %78 : vector<16x32xf32>
    %80 = vector.shape_cast %60 : vector<32xf32> to vector<1x32xf32>
    %81 = vector.broadcast %80 : vector<1x32xf32> to vector<16x32xf32>
    %82 = arith.addf %79, %81 : vector<16x32xf32>
    %83 = arith.truncf %82 : vector<16x32xf32> to vector<16x32xbf16>
    %c0_31 = arith.constant 0 : index
    %c0_32 = arith.constant 0 : index
    %84 = vector.load %arg8[%c0_31, %c0_32] : memref<32x32xbf16, #tpu.memory_space<vmem>>, vector<32x32xbf16>
    %cst_33 = arith.constant dense<0.000000e+00> : vector<16x32xf32>
    %85 = tpu.matmul %27, %84, %cst_33 {dimension_numbers = #tpu.dot_dimension_numbers<[1], [0], [0], [1], [0, 0, 1, 1], [], []>} : vector<16x32xbf16>, vector<32x32xbf16>, vector<16x32xf32> -> vector<16x32xf32>
    %86 = arith.truncf %85 : vector<16x32xf32> to vector<16x32xbf16>
    %c0_34 = arith.constant 0 : index
    %c0_35 = arith.constant 0 : index
    %87 = vector.load %arg11[%c0_34, %c0_35] : memref<16x32xbf16, #tpu.memory_space<vmem>>, vector<16x32xbf16>
    tpu.vector_store %arg11[%c0_34, %c0_35], %86 {strides = array<i32>} : memref<16x32xbf16, #tpu.memory_space<vmem>>, vector<16x32xbf16>,
    %c0_36 = arith.constant 0 : index
    %c0_37 = arith.constant 0 : index
    %88 = vector.load %arg9[%c0_36, %c0_37] : memref<32x32xbf16, #tpu.memory_space<vmem>>, vector<32x32xbf16>
    %cst_38 = arith.constant dense<0.000000e+00> : vector<16x32xf32>
    %89 = tpu.matmul %55, %88, %cst_38 {dimension_numbers = #tpu.dot_dimension_numbers<[1], [0], [0], [1], [0, 0, 1, 1], [], []>} : vector<16x32xbf16>, vector<32x32xbf16>, vector<16x32xf32> -> vector<16x32xf32>
    %90 = arith.truncf %89 : vector<16x32xf32> to vector<16x32xbf16>
    %c0_39 = arith.constant 0 : index
    %c0_40 = arith.constant 0 : index
    %91 = vector.load %arg12[%c0_39, %c0_40] : memref<16x32xbf16, #tpu.memory_space<vmem>>, vector<16x32xbf16>
    tpu.vector_store %arg12[%c0_39, %c0_40], %90 {strides = array<i32>} : memref<16x32xbf16, #tpu.memory_space<vmem>>, vector<16x32xbf16>,
    %c0_41 = arith.constant 0 : index
    %c0_42 = arith.constant 0 : index
    %92 = vector.load %arg10[%c0_41, %c0_42] : memref<32x32xbf16, #tpu.memory_space<vmem>>, vector<32x32xbf16>
    %cst_43 = arith.constant dense<0.000000e+00> : vector<16x32xf32>
    %93 = tpu.matmul %83, %92, %cst_43 {dimension_numbers = #tpu.dot_dimension_numbers<[1], [0], [0], [1], [0, 0, 1, 1], [], []>} : vector<16x32xbf16>, vector<32x32xbf16>, vector<16x32xf32> -> vector<16x32xf32>
    %94 = arith.truncf %93 : vector<16x32xf32> to vector<16x32xbf16>
    %c0_44 = arith.constant 0 : index
    %c0_45 = arith.constant 0 : index
    %95 = vector.load %arg13[%c0_44, %c0_45] : memref<16x32xbf16, #tpu.memory_space<vmem>>, vector<16x32xbf16>
    tpu.vector_store %arg13[%c0_44, %c0_45], %94 {strides = array<i32>} : memref<16x32xbf16, #tpu.memory_space<vmem>>, vector<16x32xbf16>,
    return
  }
  func.func @transform_0(%arg0: i32) -> (i32, i32) {
    %c0_i32 = arith.constant 0 : i32
    %c0_i32_0 = arith.constant 0 : i32
    return %arg0, %c0_i32 : i32, i32
  }
  func.func @transform_1(%arg0: i32) -> (i32, i32) {
    %c0_i32 = arith.constant 0 : i32
    %c0_i32_0 = arith.constant 0 : i32
    return %arg0, %c0_i32 : i32, i32
  }
  func.func @transform_2(%arg0: i32) -> (i32, i32) {
    %c0_i32 = arith.constant 0 : i32
    %c0_i32_0 = arith.constant 0 : i32
    return %arg0, %c0_i32 : i32, i32
  }
  func.func @transform_3(%arg0: i32) -> (i32, i32) {
    %c0_i32 = arith.constant 0 : i32
    %c0_i32_0 = arith.constant 0 : i32
    %c0_i32_1 = arith.constant 0 : i32
    return %c0_i32, %c0_i32_0 : i32, i32
  }
  func.func @transform_4(%arg0: i32) -> (i32, i32) {
    %c0_i32 = arith.constant 0 : i32
    %c0_i32_0 = arith.constant 0 : i32
    %c0_i32_1 = arith.constant 0 : i32
    return %c0_i32, %c0_i32_0 : i32, i32
  }
  func.func @transform_5(%arg0: i32) -> (i32, i32) {
    %c0_i32 = arith.constant 0 : i32
    %c0_i32_0 = arith.constant 0 : i32
    %c0_i32_1 = arith.constant 0 : i32
    return %c0_i32, %c0_i32_0 : i32, i32
  }
  func.func @transform_6(%arg0: i32) -> (i32, i32) {
    %c0_i32 = arith.constant 0 : i32
    %c0_i32_0 = arith.constant 0 : i32
    %c0_i32_1 = arith.constant 0 : i32
    return %c0_i32, %c0_i32_0 : i32, i32
  }
  func.func @transform_7(%arg0: i32) -> (i32, i32) {
    %c0_i32 = arith.constant 0 : i32
    %c0_i32_0 = arith.constant 0 : i32
    %c0_i32_1 = arith.constant 0 : i32
    return %c0_i32, %c0_i32_0 : i32, i32
  }
  func.func @transform_8(%arg0: i32) -> (i32, i32) {
    %c0_i32 = arith.constant 0 : i32
    %c0_i32_0 = arith.constant 0 : i32
    %c0_i32_1 = arith.constant 0 : i32
    return %c0_i32, %c0_i32_0 : i32, i32
  }
  func.func @transform_9(%arg0: i32) -> (i32, i32) {
    %c0_i32 = arith.constant 0 : i32
    %c0_i32_0 = arith.constant 0 : i32
    %c0_i32_1 = arith.constant 0 : i32
    return %c0_i32, %c0_i32_0 : i32, i32
  }
  func.func @transform_10(%arg0: i32) -> (i32, i32) {
    %c0_i32 = arith.constant 0 : i32
    %c0_i32_0 = arith.constant 0 : i32
    return %arg0, %c0_i32 : i32, i32
  }
  func.func @transform_11(%arg0: i32) -> (i32, i32) {
    %c0_i32 = arith.constant 0 : i32
    %c0_i32_0 = arith.constant 0 : i32
    return %arg0, %c0_i32 : i32, i32
  }
  func.func @transform_12(%arg0: i32) -> (i32, i32) {
    %c0_i32 = arith.constant 0 : i32
    %c0_i32_0 = arith.constant 0 : i32
    return %arg0, %c0_i32 : i32, i32
  }
}

module attributes {stable_mosaic.version = 11 : i64} {
  func.func @qkv_kernel(%arg0: i32, %arg1: memref<16x32xf32, #tpu.memory_space<vmem>>, %arg2: memref<16x32xf32, #tpu.memory_space<vmem>>, %arg3: memref<16x32xf32, #tpu.memory_space<vmem>>, %arg4: memref<1x32xf32, #tpu.memory_space<vmem>>, %arg5: memref<1x32xf32, #tpu.memory_space<vmem>>, %arg6: memref<1x32xf32, #tpu.memory_space<vmem>>, %arg7: memref<1x32xf32, #tpu.memory_space<vmem>>, %arg8: memref<32x32xbf16, #tpu.memory_space<vmem>>, %arg9: memref<32x32xbf16, #tpu.memory_space<vmem>>, %arg10: memref<32x32xbf16, #tpu.memory_space<vmem>>, %arg11: memref<16x32xbf16, #tpu.memory_space<vmem>>, %arg12: memref<16x32xbf16, #tpu.memory_space<vmem>>, %arg13: memref<16x32xbf16, #tpu.memory_space<vmem>>) attributes {dimension_semantics = [#tpu.dimension_semantics<parallel>], iteration_bounds = array<i64: 1>, scalar_prefetch = 0 : i64, scratch_operands = 0 : i64, tpu.core_type = #tpu.core_type<tc>, window_params = [{transform_indices = @transform_0, window_bounds = array<i64: 16, 32>}, {transform_indices = @transform_1, window_bounds = array<i64: 16, 32>}, {transform_indices = @transform_2, window_bounds = array<i64: 16, 32>}, {pipeline_mode = #tpu.pipeline_mode<synchronous>, transform_indices = @transform_3, window_bounds = array<i64: 1, 32>}, {pipeline_mode = #tpu.pipeline_mode<synchronous>, transform_indices = @transform_4, window_bounds = array<i64: 1, 32>}, {pipeline_mode = #tpu.pipeline_mode<synchronous>, transform_indices = @transform_5, window_bounds = array<i64: 1, 32>}, {pipeline_mode = #tpu.pipeline_mode<synchronous>, transform_indices = @transform_6, window_bounds = array<i64: 1, 32>}, {pipeline_mode = #tpu.pipeline_mode<synchronous>, transform_indices = @transform_7, window_bounds = array<i64: 32, 32>}, {pipeline_mode = #tpu.pipeline_mode<synchronous>, transform_indices = @transform_8, window_bounds = array<i64: 32, 32>}, {pipeline_mode = #tpu.pipeline_mode<synchronous>, transform_indices = @transform_9, window_bounds = array<i64: 32, 32>}, {transform_indices = @transform_10, window_bounds = array<i64: 16, 32>}, {transform_indices = @transform_11, window_bounds = array<i64: 16, 32>}, {transform_indices = @transform_12, window_bounds = array<i64: 16, 32>}]} {
    %c0 = arith.constant 0 : index
    %c0_0 = arith.constant 0 : index
    %0 = vector.load %arg1[%c0, %c0_0] : memref<16x32xf32, #tpu.memory_space<vmem>>, vector<16x32xf32>
    %c0_1 = arith.constant 0 : index
    %c0_2 = arith.constant 0 : index
    %1 = vector.load %arg4[%c0_1, %c0_2] : memref<1x32xf32, #tpu.memory_space<vmem>>, vector<1x32xf32>
    %2 = vector.shape_cast %1 : vector<1x32xf32> to vector<32xf32>
    %c0_3 = arith.constant 0 : index
    %c0_4 = arith.constant 0 : index
    %3 = vector.load %arg5[%c0_3, %c0_4] : memref<1x32xf32, #tpu.memory_space<vmem>>, vector<1x32xf32>
    %4 = vector.shape_cast %3 : vector<1x32xf32> to vector<32xf32>
    %cst = arith.constant dense<0.000000e+00> : vector<16xf32>
    %5 = vector.multi_reduction <add>, %0, %cst [1] : vector<16x32xf32> to vector<16xf32>
    %6 = vector.shape_cast %5 : vector<16xf32> to vector<16x1xf32>
    %cst_5 = arith.constant 3.200000e+01 : f32
    %7 = vector.broadcast %cst_5 : f32 to vector<16x1xf32>
    %8 = arith.divf %6, %7 : vector<16x1xf32>
    %9 = vector.broadcast %8 : vector<16x1xf32> to vector<16x32xf32>
    %10 = arith.subf %0, %9 : vector<16x32xf32>
    %11 = arith.mulf %10, %10 : vector<16x32xf32>
    %cst_6 = arith.constant dense<0.000000e+00> : vector<16xf32>
    %12 = vector.multi_reduction <add>, %11, %cst_6 [1] : vector<16x32xf32> to vector<16xf32>
    %13 = vector.shape_cast %12 : vector<16xf32> to vector<16x1xf32>
    %cst_7 = arith.constant 3.200000e+01 : f32
    %14 = vector.broadcast %cst_7 : f32 to vector<16x1xf32>
    %15 = arith.divf %13, %14 : vector<16x1xf32>
    %cst_8 = arith.constant 9.99999974E-6 : f32
    %16 = vector.broadcast %cst_8 : f32 to vector<16x1xf32>
    %17 = arith.addf %15, %16 : vector<16x1xf32>
    %18 = math.rsqrt %17 : vector<16x1xf32>
    %19 = vector.broadcast %18 : vector<16x1xf32> to vector<16x32xf32>
    %20 = arith.mulf %10, %19 : vector<16x32xf32>
    %21 = vector.shape_cast %2 : vector<32xf32> to vector<1x32xf32>
    %22 = vector.broadcast %21 : vector<1x32xf32> to vector<16x32xf32>
    %23 = arith.mulf %20, %22 : vector<16x32xf32>
    %24 = vector.shape_cast %4 : vector<32xf32> to vector<1x32xf32>
    %25 = vector.broadcast %24 : vector<1x32xf32> to vector<16x32xf32>
    %26 = arith.addf %23, %25 : vector<16x32xf32>
    %27 = arith.truncf %26 : vector<16x32xf32> to vector<16x32xbf16>
    %c0_9 = arith.constant 0 : index
    %c0_10 = arith.constant 0 : index
    %28 = vector.load %arg2[%c0_9, %c0_10] : memref<16x32xf32, #tpu.memory_space<vmem>>, vector<16x32xf32>
    %c0_11 = arith.constant 0 : index
    %c0_12 = arith.constant 0 : index
    %29 = vector.load %arg4[%c0_11, %c0_12] : memref<1x32xf32, #tpu.memory_space<vmem>>, vector<1x32xf32>
    %30 = vector.shape_cast %29 : vector<1x32xf32> to vector<32xf32>
    %c0_13 = arith.constant 0 : index
    %c0_14 = arith.constant 0 : index
    %31 = vector.load %arg5[%c0_13, %c0_14] : memref<1x32xf32, #tpu.memory_space<vmem>>, vector<1x32xf32>
    %32 = vector.shape_cast %31 : vector<1x32xf32> to vector<32xf32>
    %cst_15 = arith.constant dense<0.000000e+00> : vector<16xf32>
    %33 = vector.multi_reduction <add>, %28, %cst_15 [1] : vector<16x32xf32> to vector<16xf32>
    %34 = vector.shape_cast %33 : vector<16xf32> to vector<16x1xf32>
    %cst_16 = arith.constant 3.200000e+01 : f32
    %35 = vector.broadcast %cst_16 : f32 to vector<16x1xf32>
    %36 = arith.divf %34, %35 : vector<16x1xf32>
    %37 = vector.broadcast %36 : vector<16x1xf32> to vector<16x32xf32>
    %38 = arith.subf %28, %37 : vector<16x32xf32>
    %39 = arith.mulf %38, %38 : vector<16x32xf32>
    %cst_17 = arith.constant dense<0.000000e+00> : vector<16xf32>
    %40 = vector.multi_reduction <add>, %39, %cst_17 [1] : vector<16x32xf32> to vector<16xf32>
    %41 = vector.shape_cast %40 : vector<16xf32> to vector<16x1xf32>
    %cst_18 = arith.constant 3.200000e+01 : f32
    %42 = vector.broadcast %cst_18 : f32 to vector<16x1xf32>
    %43 = arith.divf %41, %42 : vector<16x1xf32>
    %cst_19 = arith.constant 9.99999974E-6 : f32
    %44 = vector.broadcast %cst_19 : f32 to vector<16x1xf32>
    %45 = arith.addf %43, %44 : vector<16x1xf32>
    %46 = math.rsqrt %45 : vector<16x1xf32>
    %47 = vector.broadcast %46 : vector<16x1xf32> to vector<16x32xf32>
    %48 = arith.mulf %38, %47 : vector<16x32xf32>
    %49 = vector.shape_cast %30 : vector<32xf32> to vector<1x32xf32>
    %50 = vector.broadcast %49 : vector<1x32xf32> to vector<16x32xf32>
    %51 = arith.mulf %48, %50 : vector<16x32xf32>
    %52 = vector.shape_cast %32 : vector<32xf32> to vector<1x32xf32>
    %53 = vector.broadcast %52 : vector<1x32xf32> to vector<16x32xf32>
    %54 = arith.addf %51, %53 : vector<16x32xf32>
    %55 = arith.truncf %54 : vector<16x32xf32> to vector<16x32xbf16>
    %c0_20 = arith.constant 0 : index
    %c0_21 = arith.constant 0 : index
    %56 = vector.load %arg3[%c0_20, %c0_21] : memref<16x32xf32, #tpu.memory_space<vmem>>, vector<16x32xf32>
    %c0_22 = arith.constant 0 : index
    %c0_23 = arith.constant 0 : index
    %57 = vector.load %arg6[%c0_22, %c0_23] : memref<1x32xf32, #tpu.memory_space<vmem>>, vector<1x32xf32>
    %58 = vector.shape_cast %57 : vector<1x32xf32> to vector<32xf32>
    %c0_24 = arith.constant 0 : index
    %c0_25 = arith.constant 0 : index
    %59 = vector.load %arg7[%c0_24, %c0_25] : memref<1x32xf32, #tpu.memory_space<vmem>>, vector<1x32xf32>
    %60 = vector.shape_cast %59 : vector<1x32xf32> to vector<32xf32>
    %cst_26 = arith.constant dense<0.000000e+00> : vector<16xf32>
    %61 = vector.multi_reduction <add>, %56, %cst_26 [1] : vector<16x32xf32> to vector<16xf32>
    %62 = vector.shape_cast %61 : vector<16xf32> to vector<16x1xf32>
    %cst_27 = arith.constant 3.200000e+01 : f32
    %63 = vector.broadcast %cst_27 : f32 to vector<16x1xf32>
    %64 = arith.divf %62, %63 : vector<16x1xf32>
    %65 = vector.broadcast %64 : vector<16x1xf32> to vector<16x32xf32>
    %66 = arith.subf %56, %65 : vector<16x32xf32>
    %67 = arith.mulf %66, %66 : vector<16x32xf32>
    %cst_28 = arith.constant dense<0.000000e+00> : vector<16xf32>
    %68 = vector.multi_reduction <add>, %67, %cst_28 [1] : vector<16x32xf32> to vector<16xf32>
    %69 = vector.shape_cast %68 : vector<16xf32> to vector<16x1xf32>
    %cst_29 = arith.constant 3.200000e+01 : f32
    %70 = vector.broadcast %cst_29 : f32 to vector<16x1xf32>
    %71 = arith.divf %69, %70 : vector<16x1xf32>
    %cst_30 = arith.constant 9.99999974E-6 : f32
    %72 = vector.broadcast %cst_30 : f32 to vector<16x1xf32>
    %73 = arith.addf %71, %72 : vector<16x1xf32>
    %74 = math.rsqrt %73 : vector<16x1xf32>
    %75 = vector.broadcast %74 : vector<16x1xf32> to vector<16x32xf32>
    %76 = arith.mulf %66, %75 : vector<16x32xf32>
    %77 = vector.shape_cast %58 : vector<32xf32> to vector<1x32xf32>
    %78 = vector.broadcast %77 : vector<1x32xf32> to vector<16x32xf32>
    %79 = arith.mulf %76, %78 : vector<16x32xf32>
    %80 = vector.shape_cast %60 : vector<32xf32> to vector<1x32xf32>
    %81 = vector.broadcast %80 : vector<1x32xf32> to vector<16x32xf32>
    %82 = arith.addf %79, %81 : vector<16x32xf32>
    %83 = arith.truncf %82 : vector<16x32xf32> to vector<16x32xbf16>
    %c0_31 = arith.constant 0 : index
    %c0_32 = arith.constant 0 : index
    %84 = vector.load %arg8[%c0_31, %c0_32] : memref<32x32xbf16, #tpu.memory_space<vmem>>, vector<32x32xbf16>
    %cst_33 = arith.constant dense<0.000000e+00> : vector<16x32xf32>
    %85 = tpu.matmul %27, %84, %cst_33 {dimension_numbers = #tpu.dot_dimension_numbers<[1], [0], [0], [1], [0, 0, 1, 1], [], []>} : vector<16x32xbf16>, vector<32x32xbf16>, vector<16x32xf32> -> vector<16x32xf32>
    %86 = arith.truncf %85 : vector<16x32xf32> to vector<16x32xbf16>
    %c0_34 = arith.constant 0 : index
    %c0_35 = arith.constant 0 : index
    %87 = vector.load %arg11[%c0_34, %c0_35] : memref<16x32xbf16, #tpu.memory_space<vmem>>, vector<16x32xbf16>
    tpu.vector_store %arg11[%c0_34, %c0_35], %86 {strides = array<i32>} : memref<16x32xbf16, #tpu.memory_space<vmem>>, vector<16x32xbf16>,
    %c0_36 = arith.constant 0 : index
    %c0_37 = arith.constant 0 : index
    %88 = vector.load %arg9[%c0_36, %c0_37] : memref<32x32xbf16, #tpu.memory_space<vmem>>, vector<32x32xbf16>
    %cst_38 = arith.constant dense<0.000000e+00> : vector<16x32xf32>
    %89 = tpu.matmul %55, %88, %cst_38 {dimension_numbers = #tpu.dot_dimension_numbers<[1], [0], [0], [1], [0, 0, 1, 1], [], []>} : vector<16x32xbf16>, vector<32x32xbf16>, vector<16x32xf32> -> vector<16x32xf32>
    %90 = arith.truncf %89 : vector<16x32xf32> to vector<16x32xbf16>
    %c0_39 = arith.constant 0 : index
    %c0_40 = arith.constant 0 : index
    %91 = vector.load %arg12[%c0_39, %c0_40] : memref<16x32xbf16, #tpu.memory_space<vmem>>, vector<16x32xbf16>
    tpu.vector_store %arg12[%c0_39, %c0_40], %90 {strides = array<i32>} : memref<16x32xbf16, #tpu.memory_space<vmem>>, vector<16x32xbf16>,
    %c0_41 = arith.constant 0 : index
    %c0_42 = arith.constant 0 : index
    %92 = vector.load %arg10[%c0_41, %c0_42] : memref<32x32xbf16, #tpu.memory_space<vmem>>, vector<32x32xbf16>
    %cst_43 = arith.constant dense<0.000000e+00> : vector<16x32xf32>
    %93 = tpu.matmul %83, %92, %cst_43 {dimension_numbers = #tpu.dot_dimension_numbers<[1], [0], [0], [1], [0, 0, 1, 1], [], []>} : vector<16x32xbf16>, vector<32x32xbf16>, vector<16x32xf32> -> vector<16x32xf32>
    %94 = arith.truncf %93 : vector<16x32xf32> to vector<16x32xbf16>
    %c0_44 = arith.constant 0 : index
    %c0_45 = arith.constant 0 : index
    %95 = vector.load %arg13[%c0_44, %c0_45] : memref<16x32xbf16, #tpu.memory_space<vmem>>, vector<16x32xbf16>
    tpu.vector_store %arg13[%c0_44, %c0_45], %94 {strides = array<i32>} : memref<16x32xbf16, #tpu.memory_space<vmem>>, vector<16x32xbf16>,
    return
  }
  func.func @transform_0(%arg0: i32) -> (i32, i32) {
    %c0_i32 = arith.constant 0 : i32
    %c0_i32_0 = arith.constant 0 : i32
    return %arg0, %c0_i32 : i32, i32
  }
  func.func @transform_1(%arg0: i32) -> (i32, i32) {
    %c0_i32 = arith.constant 0 : i32
    %c0_i32_0 = arith.constant 0 : i32
    return %arg0, %c0_i32 : i32, i32
  }
  func.func @transform_2(%arg0: i32) -> (i32, i32) {
    %c0_i32 = arith.constant 0 : i32
    %c0_i32_0 = arith.constant 0 : i32
    return %arg0, %c0_i32 : i32, i32
  }
  func.func @transform_3(%arg0: i32) -> (i32, i32) {
    %c0_i32 = arith.constant 0 : i32
    %c0_i32_0 = arith.constant 0 : i32
    %c0_i32_1 = arith.constant 0 : i32
    return %c0_i32, %c0_i32_0 : i32, i32
  }
  func.func @transform_4(%arg0: i32) -> (i32, i32) {
    %c0_i32 = arith.constant 0 : i32
    %c0_i32_0 = arith.constant 0 : i32
    %c0_i32_1 = arith.constant 0 : i32
    return %c0_i32, %c0_i32_0 : i32, i32
  }
  func.func @transform_5(%arg0: i32) -> (i32, i32) {
    %c0_i32 = arith.constant 0 : i32
    %c0_i32_0 = arith.constant 0 : i32
    %c0_i32_1 = arith.constant 0 : i32
    return %c0_i32, %c0_i32_0 : i32, i32
  }
  func.func @transform_6(%arg0: i32) -> (i32, i32) {
    %c0_i32 = arith.constant 0 : i32
    %c0_i32_0 = arith.constant 0 : i32
    %c0_i32_1 = arith.constant 0 : i32
    return %c0_i32, %c0_i32_0 : i32, i32
  }
  func.func @transform_7(%arg0: i32) -> (i32, i32) {
    %c0_i32 = arith.constant 0 : i32
    %c0_i32_0 = arith.constant 0 : i32
    %c0_i32_1 = arith.constant 0 : i32
    return %c0_i32, %c0_i32_0 : i32, i32
  }
  func.func @transform_8(%arg0: i32) -> (i32, i32) {
    %c0_i32 = arith.constant 0 : i32
    %c0_i32_0 = arith.constant 0 : i32
    %c0_i32_1 = arith.constant 0 : i32
    return %c0_i32, %c0_i32_0 : i32, i32
  }
  func.func @transform_9(%arg0: i32) -> (i32, i32) {
    %c0_i32 = arith.constant 0 : i32
    %c0_i32_0 = arith.constant 0 : i32
    %c0_i32_1 = arith.constant 0 : i32
    return %c0_i32, %c0_i32_0 : i32, i32
  }
  func.func @transform_10(%arg0: i32) -> (i32, i32) {
    %c0_i32 = arith.constant 0 : i32
    %c0_i32_0 = arith.constant 0 : i32
    return %arg0, %c0_i32 : i32, i32
  }
  func.func @transform_11(%arg0: i32) -> (i32, i32) {
    %c0_i32 = arith.constant 0 : i32
    %c0_i32_0 = arith.constant 0 : i32
    return %arg0, %c0_i32 : i32, i32
  }
  func.func @transform_12(%arg0: i32) -> (i32, i32) {
    %c0_i32 = arith.constant 0 : i32
    %c0_i32_0 = arith.constant 0 : i32
    return %arg0, %c0_i32 : i32, i32
  }
}

</mosaic_0001>

<llo_original>
// kernel: tpu_custom_call.1
$region0: #{tpu_custom_call.1}
  #allocation0 [shape = 'u32[]', space=smem, size = 0x4, offset = 0x4, fixed_abs, tag = 'smem constant byte address 0x4 - core index']
  #allocation1 [shape = 'u32[144,128]{1,0:T(1,128)}', space=vmem, size = 0x12000, scoped, tag = 'internal scratch']
  %s0 = inlined_call_operand.hbm [shape: f32[16,32], index: 0, kind: input, shape index: {}]
  %s1 = inlined_call_operand.hbm [shape: f32[16,32], index: 1, kind: input, shape index: {}]
  %s2 = inlined_call_operand.hbm [shape: f32[16,32], index: 2, kind: input, shape index: {}]
  %s3 = inlined_call_operand.hbm [shape: f32[1,32], index: 3, kind: input, shape index: {}]
  %s4 = inlined_call_operand.hbm [shape: f32[1,32], index: 4, kind: input, shape index: {}]
  %s5 = inlined_call_operand.hbm [shape: f32[1,32], index: 5, kind: input, shape index: {}]
  %s6 = inlined_call_operand.hbm [shape: f32[1,32], index: 6, kind: input, shape index: {}]
  %s7 = inlined_call_operand.hbm [shape: bf16[32,32], index: 7, kind: input, shape index: {}]
  %s8 = inlined_call_operand.hbm [shape: bf16[32,32], index: 8, kind: input, shape index: {}]
  %s9 = inlined_call_operand.vmem [shape: bf16[32,32], index: 9, kind: input, shape index: {}]
  %s10 = inlined_call_operand.hbm [shape: bf16[16,32], index: 10, kind: output, shape index: {0}]
  %s11 = inlined_call_operand.hbm [shape: bf16[16,32], index: 11, kind: output, shape index: {1}]
  %s12 = inlined_call_operand.hbm [shape: bf16[16,32], index: 12, kind: output, shape index: {2}]
  %13 = xla_tuple %s10, %s11, %s12
  %s14 = sld [smem:[#allocation0]]
  $region102: #{tpu_custom_call.1} parent=0
    _
  %s16 = ssub.s32 1, %s14
  %s17 = scalar_select 0, %s16, %s14
  $region1: #{tpu_custom_call.1} parent=0
    #allocation2 [shape = 'u8[8192]{0}', space=vmem, size = 0x2000, scoped, tag = 'input window, operand 0, single buffered']
    #allocation3 [shape = 's32[1]{0}', space=sflag, size = 0x4, scoped, tag = 'scoped memory for tpu_custom_call.1']
    #allocation4 [shape = 's32[1]{0}', space=sflag, size = 0x4, scoped, tag = 'scoped memory for tpu_custom_call.1']
    #allocation5 [shape = 'u8[8192]{0}', space=vmem, size = 0x2000, scoped, tag = 'input window, operand 1, single buffered']
    #allocation6 [shape = 's32[1]{0}', space=sflag, size = 0x4, scoped, tag = 'scoped memory for tpu_custom_call.1']
    #allocation7 [shape = 'u8[8192]{0}', space=vmem, size = 0x2000, scoped, tag = 'input window, operand 2, single buffered']
    #allocation8 [shape = 'u8[512]{0}', space=vmem, size = 0x400, scoped, tag = 'input window, operand 3, single buffered']
    #allocation9 [shape = 's32[1]{0}', space=sflag, size = 0x4, scoped, tag = 'scoped memory for tpu_custom_call.1']
    #allocation10 [shape = 'u8[512]{0}', space=vmem, size = 0x400, scoped, tag = 'input window, operand 4, single buffered']
    #allocation11 [shape = 'u8[512]{0}', space=vmem, size = 0x400, scoped, tag = 'input window, operand 5, single buffered']
    #allocation12 [shape = 's32[1]{0}', space=sflag, size = 0x4, scoped, tag = 'scoped memory for tpu_custom_call.1']
    #allocation13 [shape = 'u8[512]{0}', space=vmem, size = 0x400, scoped, tag = 'input window, operand 6, single buffered']
    #allocation14 [shape = 'u8[8192]{0}', space=vmem, size = 0x2000, scoped, tag = 'input window, operand 7, single buffered']
    #allocation15 [shape = 's32[1]{0}', space=sflag, size = 0x4, scoped, tag = 'scoped memory for tpu_custom_call.1']
    #allocation16 [shape = 'u8[8192]{0}', space=vmem, size = 0x2000, scoped, tag = 'input window, operand 8, single buffered']
    #allocation17 [shape = 'u8[4096]{0}', space=vmem, size = 0x1000, scoped, tag = 'output window, operand 0, single buffered']
    #allocation18 [shape = 'u8[4096]{0}', space=vmem, size = 0x1000, scoped, tag = 'output window, operand 1, single buffered']
    #allocation19 [shape = 's32[1]{0}', space=sflag, size = 0x4, scoped, tag = 'scoped memory for tpu_custom_call.1']
    #allocation20 [shape = 'u8[4096]{0}', space=vmem, size = 0x1000, scoped, tag = 'output window, operand 2, single buffered']
    %18 = vsyncpa [#allocation3], 0
    %19 = vsyncpa [#allocation6], 0
    %20 = vsyncpa [#allocation9], 0
    %21 = vsyncpa [#allocation12], 0
    %22 = vsyncpa [#allocation15], 0
    %23 = vsyncpa [#allocation4], 0
    %24 = vsyncpa [#allocation19], 0
    // Predicated region
    $region2: #{tpu_custom_call.1} parent=1 // pred_check
      _
    $region3: #{tpu_custom_call.1} parent=1 // pred_check_branch
      %26 = sbr.rel (0) target = $region5
    $region4: #{tpu_custom_call.1} parent=1 // pred_region
      %s28 = ssub.s32 256, 256
      %29 = vsyncadd [#allocation3], %s28
      %s30 = sshll.u32 [#allocation2], 4
      %s31 = int_to_ptr.vmem [resolvable:$true] %s30
      %36 = dma.hbm_to_vmem [thread:$0]  %s0, 256, %s31, [#allocation3], 128, 128, 8
    $region5: #{tpu_custom_call.1} parent=1 // pred_fallthru
      _
    // Predicated region
    $region6: #{tpu_custom_call.1} parent=1 // pred_check
      _
    $region7: #{tpu_custom_call.1} parent=1 // pred_check_branch
      %38 = sbr.rel (0) target = $region9
    $region8: #{tpu_custom_call.1} parent=1 // pred_region
      %s40 = ssub.s32 256, 256
      %41 = vsyncadd [#allocation6], %s40
      %s42 = sshll.u32 [#allocation5], 4
      %s43 = int_to_ptr.vmem [resolvable:$true] %s42
      %48 = dma.hbm_to_vmem [thread:$0]  %s1, 256, %s43, [#allocation6], 128, 128, 8
    $region9: #{tpu_custom_call.1} parent=1 // pred_fallthru
      _
    // Predicated region
    $region10: #{tpu_custom_call.1} parent=1 // pred_check
      _
    $region11: #{tpu_custom_call.1} parent=1 // pred_check_branch
      %50 = sbr.rel (0) target = $region13
    $region12: #{tpu_custom_call.1} parent=1 // pred_region
      %s52 = ssub.s32 256, 256
      %53 = vsyncadd [#allocation6], %s52
      %s54 = sshll.u32 [#allocation7], 4
      %s55 = int_to_ptr.vmem [resolvable:$true] %s54
      %60 = dma.hbm_to_vmem [thread:$0]  %s2, 256, %s55, [#allocation6], 128, 128, 8
    $region13: #{tpu_custom_call.1} parent=1 // pred_fallthru
      _
    // Predicated region
    $region14: #{tpu_custom_call.1} parent=1 // pred_check
      _
    $region15: #{tpu_custom_call.1} parent=1 // pred_check_branch
      %62 = sbr.rel (0) target = $region17
    $region16: #{tpu_custom_call.1} parent=1 // pred_region
      %s64 = ssub.s32 16, 16
      %65 = vsyncadd [#allocation9], %s64
      %s67 = sshll.u32 [#allocation8], 4
      %s68 = int_to_ptr.vmem [resolvable:$true] %s67
      %70 = dma.hbm_to_vmem [thread:$0]  %s3, 16, %s68, [#allocation9]
    $region17: #{tpu_custom_call.1} parent=1 // pred_fallthru
      _
    // Predicated region
    $region18: #{tpu_custom_call.1} parent=1 // pred_check
      _
    $region19: #{tpu_custom_call.1} parent=1 // pred_check_branch
      %72 = sbr.rel (0) target = $region21
    $region20: #{tpu_custom_call.1} parent=1 // pred_region
      %s74 = ssub.s32 16, 16
      %75 = vsyncadd [#allocation9], %s74
      %s77 = sshll.u32 [#allocation10], 4
      %s78 = int_to_ptr.vmem [resolvable:$true] %s77
      %80 = dma.hbm_to_vmem [thread:$0]  %s4, 16, %s78, [#allocation9]
    $region21: #{tpu_custom_call.1} parent=1 // pred_fallthru
      _
    // Predicated region
    $region22: #{tpu_custom_call.1} parent=1 // pred_check
      _
    $region23: #{tpu_custom_call.1} parent=1 // pred_check_branch
      %82 = sbr.rel (0) target = $region25
    $region24: #{tpu_custom_call.1} parent=1 // pred_region
      %s84 = ssub.s32 16, 16
      %85 = vsyncadd [#allocation12], %s84
      %s87 = sshll.u32 [#allocation11], 4
      %s88 = int_to_ptr.vmem [resolvable:$true] %s87
      %90 = dma.hbm_to_vmem [thread:$0]  %s5, 16, %s88, [#allocation12]
    $region25: #{tpu_custom_call.1} parent=1 // pred_fallthru
      _
    // Predicated region
    $region26: #{tpu_custom_call.1} parent=1 // pred_check
      _
    $region27: #{tpu_custom_call.1} parent=1 // pred_check_branch
      %92 = sbr.rel (0) target = $region29
    $region28: #{tpu_custom_call.1} parent=1 // pred_region
      %s94 = ssub.s32 16, 16
      %95 = vsyncadd [#allocation12], %s94
      %s97 = sshll.u32 [#allocation13], 4
      %s98 = int_to_ptr.vmem [resolvable:$true] %s97
      %100 = dma.hbm_to_vmem [thread:$0]  %s6, 16, %s98, [#allocation12]
    $region29: #{tpu_custom_call.1} parent=1 // pred_fallthru
      _
    // Predicated region
    $region30: #{tpu_custom_call.1} parent=1 // pred_check
      _
    $region31: #{tpu_custom_call.1} parent=1 // pred_check_branch
      %102 = sbr.rel (0) target = $region33
    $region32: #{tpu_custom_call.1} parent=1 // pred_region
      %s104 = ssub.s32 256, 256
      %105 = vsyncadd [#allocation15], %s104
      %s106 = sshll.u32 [#allocation14], 4
      %s107 = int_to_ptr.vmem [resolvable:$true] %s106
      %112 = dma.hbm_to_vmem [thread:$0]  %s7, 256, %s107, [#allocation15], 64, 64, 4
    $region33: #{tpu_custom_call.1} parent=1 // pred_fallthru
      _
    // Predicated region
    $region34: #{tpu_custom_call.1} parent=1 // pred_check
      _
    $region35: #{tpu_custom_call.1} parent=1 // pred_check_branch
      %114 = sbr.rel (0) target = $region37
    $region36: #{tpu_custom_call.1} parent=1 // pred_region
      %s116 = ssub.s32 256, 256
      %117 = vsyncadd [#allocation15], %s116
      %s118 = sshll.u32 [#allocation16], 4
      %s119 = int_to_ptr.vmem [resolvable:$true] %s118
      %124 = dma.hbm_to_vmem [thread:$0]  %s8, 256, %s119, [#allocation15], 64, 64, 4
    $region37: #{tpu_custom_call.1} parent=1 // pred_fallthru
      _
    // Predicated region
    $region38: #{tpu_custom_call.1} parent=1 // pred_check
      _
    $region39: #{tpu_custom_call.1} parent=1 // pred_check_branch
      %126 = sbr.rel (0) target = $region41
    $region40: #{tpu_custom_call.1} parent=1 // pred_region
      _
    $region41: #{tpu_custom_call.1} parent=1 // pred_fallthru
      _
    // Predicated region
    $region42: #{tpu_custom_call.1} parent=1 // pred_check
      _
    $region43: #{tpu_custom_call.1} parent=1 // pred_check_branch
      %128 = sbr.rel (0) target = $region45
    $region44: #{tpu_custom_call.1} parent=1 // pred_region
      %129 = dma.done [#allocation3], 256
    $region45: #{tpu_custom_call.1} parent=1 // pred_fallthru
      _
    // Predicated region
    $region46: #{tpu_custom_call.1} parent=1 // pred_check
      _
    $region47: #{tpu_custom_call.1} parent=1 // pred_check_branch
      %131 = sbr.rel (0) target = $region49
    $region48: #{tpu_custom_call.1} parent=1 // pred_region
      %132 = dma.done [#allocation6], 256
    $region49: #{tpu_custom_call.1} parent=1 // pred_fallthru
      _
    // Predicated region
    $region50: #{tpu_custom_call.1} parent=1 // pred_check
      _
    $region51: #{tpu_custom_call.1} parent=1 // pred_check_branch
      %134 = sbr.rel (0) target = $region53
    $region52: #{tpu_custom_call.1} parent=1 // pred_region
      %135 = dma.done [#allocation6], 256
    $region53: #{tpu_custom_call.1} parent=1 // pred_fallthru
      _
    // Predicated region
    $region54: #{tpu_custom_call.1} parent=1 // pred_check
      _
    $region55: #{tpu_custom_call.1} parent=1 // pred_check_branch
      %137 = sbr.rel (0) target = $region57
    $region56: #{tpu_custom_call.1} parent=1 // pred_region
      %138 = dma.done [#allocation9], 16
    $region57: #{tpu_custom_call.1} parent=1 // pred_fallthru
      _
    // Predicated region
    $region58: #{tpu_custom_call.1} parent=1 // pred_check
      _
    $region59: #{tpu_custom_call.1} parent=1 // pred_check_branch
      %140 = sbr.rel (0) target = $region61
    $region60: #{tpu_custom_call.1} parent=1 // pred_region
      %141 = dma.done [#allocation9], 16
    $region61: #{tpu_custom_call.1} parent=1 // pred_fallthru
      _
    // Predicated region
    $region62: #{tpu_custom_call.1} parent=1 // pred_check
      _
    $region63: #{tpu_custom_call.1} parent=1 // pred_check_branch
      %143 = sbr.rel (0) target = $region65
    $region64: #{tpu_custom_call.1} parent=1 // pred_region
      %144 = dma.done [#allocation12], 16
    $region65: #{tpu_custom_call.1} parent=1 // pred_fallthru
      _
    // Predicated region
    $region66: #{tpu_custom_call.1} parent=1 // pred_check
      _
    $region67: #{tpu_custom_call.1} parent=1 // pred_check_branch
      %146 = sbr.rel (0) target = $region69
    $region68: #{tpu_custom_call.1} parent=1 // pred_region
      %147 = dma.done [#allocation12], 16
    $region69: #{tpu_custom_call.1} parent=1 // pred_fallthru
      _
    // Predicated region
    $region70: #{tpu_custom_call.1} parent=1 // pred_check
      _
    $region71: #{tpu_custom_call.1} parent=1 // pred_check_branch
      %149 = sbr.rel (0) target = $region73
    $region72: #{tpu_custom_call.1} parent=1 // pred_region
      %150 = dma.done [#allocation15], 256
    $region73: #{tpu_custom_call.1} parent=1 // pred_fallthru
      _
    // Predicated region
    $region74: #{tpu_custom_call.1} parent=1 // pred_check
      _
    $region75: #{tpu_custom_call.1} parent=1 // pred_check_branch
      %152 = sbr.rel (0) target = $region77
    $region76: #{tpu_custom_call.1} parent=1 // pred_region
      %153 = dma.done [#allocation15], 256
    $region77: #{tpu_custom_call.1} parent=1 // pred_fallthru
      _
    %v155 = vld [vmem:[#allocation2] sm:$0xff]
    %v156 = vld [vmem:[#allocation2 + $0x8] sm:$0xff]
    %v157 = vld [vmem:[#allocation8] sm:$0x1]
    %v158 = vld [vmem:[#allocation10] sm:$0x1]
    %vm159 = vcmask 261120
    %v160 = vsel %vm159, %v155, 0.0
    %161 = vadd.xlane.f32.xlu0 %v160
    %v162 = vpop.xlane.xlu0 %161
    %v163 = vsel %vm159, %v156, 0.0
    %164 = vadd.xlane.f32.xlu0 %v163
    %v165 = vpop.xlane.xlu0 %164
    %v166 = vrcp.pop 32.0
    %v167 = vmul.f32 %v162, %v166
    %v168 = vmul.f32 %v165, %v166
    %v169 = vsub.f32 %v155, %v167
    %v170 = vsub.f32 %v156, %v168
    %v171 = vmul.f32 %v169, %v169
    %v172 = vmul.f32 %v170, %v170
    %v173 = vsel %vm159, %v171, 0.0
    %174 = vadd.xlane.f32.xlu0 %v173
    %v175 = vpop.xlane.xlu0 %174
    %v176 = vsel %vm159, %v172, 0.0
    %177 = vadd.xlane.f32.xlu0 %v176
    %v178 = vpop.xlane.xlu0 %177
    %v179 = vmul.f32 %v175, %v166
    %v180 = vmul.f32 %v178, %v166
    %v181 = vadd.f32 %v179, 1e-05
    %v182 = vadd.f32 %v180, 1e-05
    %v183 = vrsqrt.pop %v181
    %v184 = vrsqrt.pop %v182
    %v185 = vmul.f32 %v169, %v183
    %v186 = vmul.f32 %v170, %v184
    %v188 = vlaneseq
    %v189 = vshrl.u32 %v188, 7
    %v190 = vsub.s32 0, %v189
    %v191 = vrot.slane %v157, %v190
    %v193 = vmul.f32 %v185, %v191
    %v194 = vmul.f32 %v186, %v191
    %v196 = vlaneseq
    %v197 = vshrl.u32 %v196, 7
    %v198 = vsub.s32 0, %v197
    %v199 = vrot.slane %v158, %v198
    %v201 = vadd.f32 %v193, %v199
    %v202 = vadd.f32 %v194, %v199
    %v203 = vpack.c.bf16 %v202, %v201
    %v204 = vld [vmem:[#allocation5] sm:$0xff]
    %v205 = vld [vmem:[#allocation5 + $0x8] sm:$0xff]
    %v206 = vsel %vm159, %v204, 0.0
    %207 = vadd.xlane.f32.xlu0 %v206
    %v208 = vpop.xlane.xlu0 %207
    %v209 = vsel %vm159, %v205, 0.0
    %210 = vadd.xlane.f32.xlu0 %v209
    %v211 = vpop.xlane.xlu0 %210
    %v212 = vmul.f32 %v208, %v166
    %v213 = vmul.f32 %v211, %v166
    %v214 = vsub.f32 %v204, %v212
    %v215 = vsub.f32 %v205, %v213
    %v216 = vmul.f32 %v214, %v214
    %v217 = vmul.f32 %v215, %v215
    %v218 = vsel %vm159, %v216, 0.0
    %219 = vadd.xlane.f32.xlu0 %v218
    %v220 = vpop.xlane.xlu0 %219
    %v221 = vsel %vm159, %v217, 0.0
    %222 = vadd.xlane.f32.xlu0 %v221
    %v223 = vpop.xlane.xlu0 %222
    %v224 = vmul.f32 %v220, %v166
    %v225 = vmul.f32 %v223, %v166
    %v226 = vadd.f32 %v224, 1e-05
    %v227 = vadd.f32 %v225, 1e-05
    %v228 = vrsqrt.pop %v226
    %v229 = vrsqrt.pop %v227
    %v230 = vmul.f32 %v214, %v228
    %v231 = vmul.f32 %v215, %v229
    %v232 = vmul.f32 %v230, %v191
    %v233 = vmul.f32 %v231, %v191
    %v234 = vadd.f32 %v232, %v199
    %v235 = vadd.f32 %v233, %v199
    %v236 = vpack.c.bf16 %v235, %v234
    %v237 = vld [vmem:[#allocation7] sm:$0xff]
    %v238 = vld [vmem:[#allocation7 + $0x8] sm:$0xff]
    %v239 = vld [vmem:[#allocation11] sm:$0x1]
    %v240 = vld [vmem:[#allocation13] sm:$0x1]
    %v241 = vsel %vm159, %v237, 0.0
    %242 = vadd.xlane.f32.xlu0 %v241
    %v243 = vpop.xlane.xlu0 %242
    %v244 = vsel %vm159, %v238, 0.0
    %245 = vadd.xlane.f32.xlu0 %v244
    %v246 = vpop.xlane.xlu0 %245
    %v247 = vmul.f32 %v243, %v166
    %v248 = vmul.f32 %v246, %v166
    %v249 = vsub.f32 %v237, %v247
    %v250 = vsub.f32 %v238, %v248
    %v251 = vmul.f32 %v249, %v249
    %v252 = vmul.f32 %v250, %v250
    %v253 = vsel %vm159, %v251, 0.0
    %254 = vadd.xlane.f32.xlu0 %v253
    %v255 = vpop.xlane.xlu0 %254
    %v256 = vsel %vm159, %v252, 0.0
    %257 = vadd.xlane.f32.xlu0 %v256
    %v258 = vpop.xlane.xlu0 %257
    %v259 = vmul.f32 %v255, %v166
    %v260 = vmul.f32 %v258, %v166
    %v261 = vadd.f32 %v259, 1e-05
    %v262 = vadd.f32 %v260, 1e-05
    %v263 = vrsqrt.pop %v261
    %v264 = vrsqrt.pop %v262
    %v265 = vmul.f32 %v249, %v263
    %v266 = vmul.f32 %v250, %v264
    %v268 = vlaneseq
    %v269 = vshrl.u32 %v268, 7
    %v270 = vsub.s32 0, %v269
    %v271 = vrot.slane %v239, %v270
    %v273 = vmul.f32 %v265, %v271
    %v274 = vmul.f32 %v266, %v271
    %v276 = vlaneseq
    %v277 = vshrl.u32 %v276, 7
    %v278 = vsub.s32 0, %v277
    %v279 = vrot.slane %v240, %v278
    %v281 = vadd.f32 %v273, %v279
    %v282 = vadd.f32 %v274, %v279
    %v283 = vpack.c.bf16 %v282, %v281
    %v284 = vld [vmem:[#allocation14] sm:$0xf]
    %v285 = vld [vmem:[#allocation14 + $0x4] sm:$0xf]
    %v286 = vld [vmem:[#allocation14 + $0x8] sm:$0xf]
    %v287 = vld [vmem:[#allocation14 + $0xc] sm:$0xf]
    %v292 = vunpack.c.l.b16 %v284
    %v293 = vunpack.c.l.b16 %v285
    %v294 = vunpack.c.l.b16 %v286
    %v295 = vunpack.c.l.b16 %v287
    %v296 = vpack.c.b16 %v293, %v292
    %v297 = vpack.c.b16 %v295, %v294
    %v301 = vsel %vm159, %v203, 0
    %303 = vmatprep.subr.bf16.mxu0 0
    %304 = vmatpush1.bf16.msra.mxu0 0
    %305 = vmatprep.subr.bf16.mxu0 0
    %306 = vmatpush1.bf16.msra.mxu0 0
    %307 = vmatprep.subr.bf16.mxu0 0
    %308 = vmatpush1.bf16.msra.mxu0 0
    %309 = vmatprep.subr.bf16.mxu0 0
    %310 = vmatpush1.bf16.msra.mxu0 0
    %311 = vmatprep.subr.bf16.mxu0 0
    %312 = vmatpush1.bf16.msra.mxu0 0
    %313 = vmatprep.subr.bf16.mxu0 0
    %314 = vmatpush1.bf16.msra.mxu0 0
    %315 = vmatprep.subr.bf16.mxu0 0
    %316 = vmatpush1.bf16.msra.mxu0 %v297
    %317 = vmatprep.subr.bf16.mxu0 0
    %318 = vmatpush1.bf16.msra.mxu0 %v296
    %319 = vmatprep.subr.bf16.mxu0 0
    %320 = vmatpush2.bf16.msra.mxu0 0
    %321 = vmatprep.subr.bf16.mxu0 0
    %322 = vmatpush2.bf16.msra.mxu0 0
    %323 = vmatprep.subr.bf16.mxu0 0
    %324 = vmatpush2.bf16.msra.mxu0 0
    %325 = vmatprep.subr.bf16.mxu0 0
    %326 = vmatpush2.bf16.msra.mxu0 0
    %327 = vmatprep.subr.bf16.mxu0 0
    %328 = vmatpush2.bf16.msra.mxu0 0
    %329 = vmatprep.subr.bf16.mxu0 0
    %330 = vmatpush2.bf16.msra.mxu0 0
    %331 = vmatprep.subr.bf16.mxu0 0
    %332 = vmatpush2.bf16.msra.mxu0 0
    %333 = vmatprep.subr.bf16.mxu0 0
    %334 = vmatpush2.bf16.msra.mxu0 0
    %335 = vmatprep.mubr.bf16.mxu0 0
    %336 = vmatmul.mubr.bf16.gmra.mxu0 %v301
    %v337 = vpop.f32.mrf.mxu0
    %v338 = vadd.f32 0.0, %v337
    %v339 = vpop.f32.mrf.mxu0
    %v340 = vpop.f32.mrf.mxu0
    %v341 = vadd.f32 0.0, %v340
    %v342 = vpop.f32.mrf.mxu0
    %343 = vdwg.mxu0
    %v344 = vpack.c.bf16 %v341, %v338
    %v346 = vunpack.c.l.b16 %v344
    %v347 = vunpack.c.h.b16 %v344
    %v348 = vpack.c.b16 %v346, %v346
    %v349 = vpack.c.b16 %v347, %v347
    %vm352 = vcmask 257024
    %353 = vst.msk [vmem:[#allocation17] sm:$0xf] %vm352, %v348
    %354 = vst.msk [vmem:[#allocation17 + $0x4] sm:$0xf] %vm352, %v349
    %v355 = vld [vmem:[#allocation16] sm:$0xf]
    %v356 = vld [vmem:[#allocation16 + $0x4] sm:$0xf]
    %v357 = vld [vmem:[#allocation16 + $0x8] sm:$0xf]
    %v358 = vld [vmem:[#allocation16 + $0xc] sm:$0xf]
    %v363 = vunpack.c.l.b16 %v355
    %v364 = vunpack.c.l.b16 %v356
    %v365 = vunpack.c.l.b16 %v357
    %v366 = vunpack.c.l.b16 %v358
    %v367 = vpack.c.b16 %v364, %v363
    %v368 = vpack.c.b16 %v366, %v365
    %v372 = vsel %vm159, %v236, 0
    %374 = vmatprep.subr.bf16.mxu0 0
    %375 = vmatpush1.bf16.msra.mxu0 0
    %376 = vmatprep.subr.bf16.mxu0 0
    %377 = vmatpush1.bf16.msra.mxu0 0
    %378 = vmatprep.subr.bf16.mxu0 0
    %379 = vmatpush1.bf16.msra.mxu0 0
    %380 = vmatprep.subr.bf16.mxu0 0
    %381 = vmatpush1.bf16.msra.mxu0 0
    %382 = vmatprep.subr.bf16.mxu0 0
    %383 = vmatpush1.bf16.msra.mxu0 0
    %384 = vmatprep.subr.bf16.mxu0 0
    %385 = vmatpush1.bf16.msra.mxu0 0
    %386 = vmatprep.subr.bf16.mxu0 0
    %387 = vmatpush1.bf16.msra.mxu0 %v368
    %388 = vmatprep.subr.bf16.mxu0 0
    %389 = vmatpush1.bf16.msra.mxu0 %v367
    %390 = vmatprep.subr.bf16.mxu0 0
    %391 = vmatpush2.bf16.msra.mxu0 0
    %392 = vmatprep.subr.bf16.mxu0 0
    %393 = vmatpush2.bf16.msra.mxu0 0
    %394 = vmatprep.subr.bf16.mxu0 0
    %395 = vmatpush2.bf16.msra.mxu0 0
    %396 = vmatprep.subr.bf16.mxu0 0
    %397 = vmatpush2.bf16.msra.mxu0 0
    %398 = vmatprep.subr.bf16.mxu0 0
    %399 = vmatpush2.bf16.msra.mxu0 0
    %400 = vmatprep.subr.bf16.mxu0 0
    %401 = vmatpush2.bf16.msra.mxu0 0
    %402 = vmatprep.subr.bf16.mxu0 0
    %403 = vmatpush2.bf16.msra.mxu0 0
    %404 = vmatprep.subr.bf16.mxu0 0
    %405 = vmatpush2.bf16.msra.mxu0 0
    %406 = vmatprep.mubr.bf16.mxu0 0
    %407 = vmatmul.mubr.bf16.gmra.mxu0 %v372
    %v408 = vpop.f32.mrf.mxu0
    %v409 = vadd.f32 0.0, %v408
    %v410 = vpop.f32.mrf.mxu0
    %v411 = vpop.f32.mrf.mxu0
    %v412 = vadd.f32 0.0, %v411
    %v413 = vpop.f32.mrf.mxu0
    %414 = vdwg.mxu0
    %v415 = vpack.c.bf16 %v412, %v409
    %v417 = vunpack.c.l.b16 %v415
    %v418 = vunpack.c.h.b16 %v415
    %v419 = vpack.c.b16 %v417, %v417
    %v420 = vpack.c.b16 %v418, %v418
    %423 = vst.msk [vmem:[#allocation18] sm:$0xf] %vm352, %v419
    %424 = vst.msk [vmem:[#allocation18 + $0x4] sm:$0xf] %vm352, %v420
    %v425 = vld [vmem:[%s9] sm:$0xf]
    %v426 = vld [vmem:[%s9 + $0x4] sm:$0xf]
    %v427 = vld [vmem:[%s9 + $0x8] sm:$0xf]
    %v428 = vld [vmem:[%s9 + $0xc] sm:$0xf]
    %v433 = vunpack.c.l.b16 %v425
    %v434 = vunpack.c.l.b16 %v426
    %v435 = vunpack.c.l.b16 %v427
    %v436 = vunpack.c.l.b16 %v428
    %v437 = vpack.c.b16 %v434, %v433
    %v438 = vpack.c.b16 %v436, %v435
    %v442 = vsel %vm159, %v283, 0
    %444 = vmatprep.subr.bf16.mxu0 0
    %445 = vmatpush1.bf16.msra.mxu0 0
    %446 = vmatprep.subr.bf16.mxu0 0
    %447 = vmatpush1.bf16.msra.mxu0 0
    %448 = vmatprep.subr.bf16.mxu0 0
    %449 = vmatpush1.bf16.msra.mxu0 0
    %450 = vmatprep.subr.bf16.mxu0 0
    %451 = vmatpush1.bf16.msra.mxu0 0
    %452 = vmatprep.subr.bf16.mxu0 0
    %453 = vmatpush1.bf16.msra.mxu0 0
    %454 = vmatprep.subr.bf16.mxu0 0
    %455 = vmatpush1.bf16.msra.mxu0 0
    %456 = vmatprep.subr.bf16.mxu0 0
    %457 = vmatpush1.bf16.msra.mxu0 %v438
    %458 = vmatprep.subr.bf16.mxu0 0
    %459 = vmatpush1.bf16.msra.mxu0 %v437
    %460 = vmatprep.subr.bf16.mxu0 0
    %461 = vmatpush2.bf16.msra.mxu0 0
    %462 = vmatprep.subr.bf16.mxu0 0
    %463 = vmatpush2.bf16.msra.mxu0 0
    %464 = vmatprep.subr.bf16.mxu0 0
    %465 = vmatpush2.bf16.msra.mxu0 0
    %466 = vmatprep.subr.bf16.mxu0 0
    %467 = vmatpush2.bf16.msra.mxu0 0
    %468 = vmatprep.subr.bf16.mxu0 0
    %469 = vmatpush2.bf16.msra.mxu0 0
    %470 = vmatprep.subr.bf16.mxu0 0
    %471 = vmatpush2.bf16.msra.mxu0 0
    %472 = vmatprep.subr.bf16.mxu0 0
    %473 = vmatpush2.bf16.msra.mxu0 0
    %474 = vmatprep.subr.bf16.mxu0 0
    %475 = vmatpush2.bf16.msra.mxu0 0
    %476 = vmatprep.mubr.bf16.mxu0 0
    %477 = vmatmul.mubr.bf16.gmra.mxu0 %v442
    %v478 = vpop.f32.mrf.mxu0
    %v479 = vadd.f32 0.0, %v478
    %v480 = vpop.f32.mrf.mxu0
    %v481 = vpop.f32.mrf.mxu0
    %v482 = vadd.f32 0.0, %v481
    %v483 = vpop.f32.mrf.mxu0
    %484 = vdwg.mxu0
    %v485 = vpack.c.bf16 %v482, %v479
    %v487 = vunpack.c.l.b16 %v485
    %v488 = vunpack.c.h.b16 %v485
    %v489 = vpack.c.b16 %v487, %v487
    %v490 = vpack.c.b16 %v488, %v488
    %493 = vst.msk [vmem:[#allocation20] sm:$0xf] %vm352, %v489
    %494 = vst.msk [vmem:[#allocation20 + $0x4] sm:$0xf] %vm352, %v490
    // Predicated region
    $region78: #{tpu_custom_call.1} parent=1 // pred_check
      _
    $region79: #{tpu_custom_call.1} parent=1 // pred_check_branch
      %496 = sbr.rel (0) target = $region81
    $region80: #{tpu_custom_call.1} parent=1 // pred_region
      %s498 = ssub.s32 128, 128
      %499 = vsyncadd [#allocation4], %s498
      %s500 = sshll.u32 [#allocation17], 4
      %s501 = int_to_ptr.vmem [resolvable:$true] %s500
      %506 = dma.vmem_to_hbm [thread:$0]  %s501, 128, %s10, [#allocation4], 64, 64, 4
    $region81: #{tpu_custom_call.1} parent=1 // pred_fallthru
      _
    // Predicated region
    $region82: #{tpu_custom_call.1} parent=1 // pred_check
      _
    $region83: #{tpu_custom_call.1} parent=1 // pred_check_branch
      %508 = sbr.rel (0) target = $region85
    $region84: #{tpu_custom_call.1} parent=1 // pred_region
      %s510 = ssub.s32 128, 128
      %511 = vsyncadd [#allocation19], %s510
      %s512 = sshll.u32 [#allocation18], 4
      %s513 = int_to_ptr.vmem [resolvable:$true] %s512
      %518 = dma.vmem_to_hbm [thread:$0]  %s513, 128, %s11, [#allocation19], 64, 64, 4
    $region85: #{tpu_custom_call.1} parent=1 // pred_fallthru
      _
    // Predicated region
    $region86: #{tpu_custom_call.1} parent=1 // pred_check
      _
    $region87: #{tpu_custom_call.1} parent=1 // pred_check_branch
      %520 = sbr.rel (0) target = $region89
    $region88: #{tpu_custom_call.1} parent=1 // pred_region
      %s522 = ssub.s32 128, 128
      %523 = vsyncadd [#allocation19], %s522
      %s524 = sshll.u32 [#allocation20], 4
      %s525 = int_to_ptr.vmem [resolvable:$true] %s524
      %530 = dma.vmem_to_hbm [thread:$0]  %s525, 128, %s12, [#allocation19], 64, 64, 4
    $region89: #{tpu_custom_call.1} parent=1 // pred_fallthru
      _
    // Predicated region
    $region90: #{tpu_custom_call.1} parent=1 // pred_check
      _
    $region91: #{tpu_custom_call.1} parent=1 // pred_check_branch
      %532 = sbr.rel (0) target = $region93
    $region92: #{tpu_custom_call.1} parent=1 // pred_region
      %533 = dma.done [#allocation4], 128
    $region93: #{tpu_custom_call.1} parent=1 // pred_fallthru
      _
    // Predicated region
    $region94: #{tpu_custom_call.1} parent=1 // pred_check
      _
    $region95: #{tpu_custom_call.1} parent=1 // pred_check_branch
      %535 = sbr.rel (0) target = $region97
    $region96: #{tpu_custom_call.1} parent=1 // pred_region
      %536 = dma.done [#allocation19], 128
    $region97: #{tpu_custom_call.1} parent=1 // pred_fallthru
      _
    // Predicated region
    $region98: #{tpu_custom_call.1} parent=1 // pred_check
      _
    $region99: #{tpu_custom_call.1} parent=1 // pred_check_branch
      %538 = sbr.rel (0) target = $region101
    $region100: #{tpu_custom_call.1} parent=1 // pred_region
      %539 = dma.done [#allocation19], 128
    $region101: #{tpu_custom_call.1} parent=1 // pred_fallthru
      _
    %540 = vsyncpa [#allocation3], 1
    %541 = vsyncpa [#allocation6], 1
    %542 = vsyncpa [#allocation9], 1
    %543 = vsyncpa [#allocation12], 1
    %544 = vsyncpa [#allocation15], 1
    %545 = vsyncpa [#allocation4], 1
    %546 = vsyncpa [#allocation19], 1

// kernel: tpu_custom_call.1
$region0: #{tpu_custom_call.1}
  #allocation0 [shape = 'u32[]', space=smem, size = 0x4, offset = 0x4, fixed_abs, tag = 'smem constant byte address 0x4 - core index']
  #allocation1 [shape = 'u32[144,128]{1,0:T(1,128)}', space=vmem, size = 0x12000, scoped, tag = 'internal scratch']
  %s0 = inlined_call_operand.hbm [shape: f32[16,32], index: 0, kind: input, shape index: {}]
  %s1 = inlined_call_operand.hbm [shape: f32[16,32], index: 1, kind: input, shape index: {}]
  %s2 = inlined_call_operand.hbm [shape: f32[16,32], index: 2, kind: input, shape index: {}]
  %s3 = inlined_call_operand.hbm [shape: f32[1,32], index: 3, kind: input, shape index: {}]
  %s4 = inlined_call_operand.hbm [shape: f32[1,32], index: 4, kind: input, shape index: {}]
  %s5 = inlined_call_operand.hbm [shape: f32[1,32], index: 5, kind: input, shape index: {}]
  %s6 = inlined_call_operand.hbm [shape: f32[1,32], index: 6, kind: input, shape index: {}]
  %s7 = inlined_call_operand.hbm [shape: bf16[32,32], index: 7, kind: input, shape index: {}]
  %s8 = inlined_call_operand.hbm [shape: bf16[32,32], index: 8, kind: input, shape index: {}]
  %s9 = inlined_call_operand.vmem [shape: bf16[32,32], index: 9, kind: input, shape index: {}]
  %s10 = inlined_call_operand.hbm [shape: bf16[16,32], index: 10, kind: output, shape index: {0}]
  %s11 = inlined_call_operand.hbm [shape: bf16[16,32], index: 11, kind: output, shape index: {1}]
  %s12 = inlined_call_operand.hbm [shape: bf16[16,32], index: 12, kind: output, shape index: {2}]
  %13 = xla_tuple %s10, %s11, %s12
  %s14 = sld [smem:[#allocation0]]
  $region102: #{tpu_custom_call.1} parent=0
    _
  %s16 = ssub.s32 1, %s14
  %s17 = scalar_select 0, %s16, %s14
  $region1: #{tpu_custom_call.1} parent=0
    #allocation2 [shape = 'u8[8192]{0}', space=vmem, size = 0x2000, scoped, tag = 'input window, operand 0, single buffered']
    #allocation3 [shape = 's32[1]{0}', space=sflag, size = 0x4, scoped, tag = 'scoped memory for tpu_custom_call.1']
    #allocation4 [shape = 's32[1]{0}', space=sflag, size = 0x4, scoped, tag = 'scoped memory for tpu_custom_call.1']
    #allocation5 [shape = 'u8[8192]{0}', space=vmem, size = 0x2000, scoped, tag = 'input window, operand 1, single buffered']
    #allocation6 [shape = 's32[1]{0}', space=sflag, size = 0x4, scoped, tag = 'scoped memory for tpu_custom_call.1']
    #allocation7 [shape = 'u8[8192]{0}', space=vmem, size = 0x2000, scoped, tag = 'input window, operand 2, single buffered']
    #allocation8 [shape = 'u8[512]{0}', space=vmem, size = 0x400, scoped, tag = 'input window, operand 3, single buffered']
    #allocation9 [shape = 's32[1]{0}', space=sflag, size = 0x4, scoped, tag = 'scoped memory for tpu_custom_call.1']
    #allocation10 [shape = 'u8[512]{0}', space=vmem, size = 0x400, scoped, tag = 'input window, operand 4, single buffered']
    #allocation11 [shape = 'u8[512]{0}', space=vmem, size = 0x400, scoped, tag = 'input window, operand 5, single buffered']
    #allocation12 [shape = 's32[1]{0}', space=sflag, size = 0x4, scoped, tag = 'scoped memory for tpu_custom_call.1']
    #allocation13 [shape = 'u8[512]{0}', space=vmem, size = 0x400, scoped, tag = 'input window, operand 6, single buffered']
    #allocation14 [shape = 'u8[8192]{0}', space=vmem, size = 0x2000, scoped, tag = 'input window, operand 7, single buffered']
    #allocation15 [shape = 's32[1]{0}', space=sflag, size = 0x4, scoped, tag = 'scoped memory for tpu_custom_call.1']
    #allocation16 [shape = 'u8[8192]{0}', space=vmem, size = 0x2000, scoped, tag = 'input window, operand 8, single buffered']
    #allocation17 [shape = 'u8[4096]{0}', space=vmem, size = 0x1000, scoped, tag = 'output window, operand 0, single buffered']
    #allocation18 [shape = 'u8[4096]{0}', space=vmem, size = 0x1000, scoped, tag = 'output window, operand 1, single buffered']
    #allocation19 [shape = 's32[1]{0}', space=sflag, size = 0x4, scoped, tag = 'scoped memory for tpu_custom_call.1']
    #allocation20 [shape = 'u8[4096]{0}', space=vmem, size = 0x1000, scoped, tag = 'output window, operand 2, single buffered']
    %18 = vsyncpa [#allocation3], 0
    %19 = vsyncpa [#allocation6], 0
    %20 = vsyncpa [#allocation9], 0
    %21 = vsyncpa [#allocation12], 0
    %22 = vsyncpa [#allocation15], 0
    %23 = vsyncpa [#allocation4], 0
    %24 = vsyncpa [#allocation19], 0
    // Predicated region
    $region2: #{tpu_custom_call.1} parent=1 // pred_check
      _
    $region3: #{tpu_custom_call.1} parent=1 // pred_check_branch
      %26 = sbr.rel (0) target = $region5
    $region4: #{tpu_custom_call.1} parent=1 // pred_region
      %s28 = ssub.s32 256, 256
      %29 = vsyncadd [#allocation3], %s28
      %s30 = sshll.u32 [#allocation2], 4
      %s31 = int_to_ptr.vmem [resolvable:$true] %s30
      %36 = dma.hbm_to_vmem [thread:$0]  %s0, 256, %s31, [#allocation3], 128, 128, 8
    $region5: #{tpu_custom_call.1} parent=1 // pred_fallthru
      _
    // Predicated region
    $region6: #{tpu_custom_call.1} parent=1 // pred_check
      _
    $region7: #{tpu_custom_call.1} parent=1 // pred_check_branch
      %38 = sbr.rel (0) target = $region9
    $region8: #{tpu_custom_call.1} parent=1 // pred_region
      %s40 = ssub.s32 256, 256
      %41 = vsyncadd [#allocation6], %s40
      %s42 = sshll.u32 [#allocation5], 4
      %s43 = int_to_ptr.vmem [resolvable:$true] %s42
      %48 = dma.hbm_to_vmem [thread:$0]  %s1, 256, %s43, [#allocation6], 128, 128, 8
    $region9: #{tpu_custom_call.1} parent=1 // pred_fallthru
      _
    // Predicated region
    $region10: #{tpu_custom_call.1} parent=1 // pred_check
      _
    $region11: #{tpu_custom_call.1} parent=1 // pred_check_branch
      %50 = sbr.rel (0) target = $region13
    $region12: #{tpu_custom_call.1} parent=1 // pred_region
      %s52 = ssub.s32 256, 256
      %53 = vsyncadd [#allocation6], %s52
      %s54 = sshll.u32 [#allocation7], 4
      %s55 = int_to_ptr.vmem [resolvable:$true] %s54
      %60 = dma.hbm_to_vmem [thread:$0]  %s2, 256, %s55, [#allocation6], 128, 128, 8
    $region13: #{tpu_custom_call.1} parent=1 // pred_fallthru
      _
    // Predicated region
    $region14: #{tpu_custom_call.1} parent=1 // pred_check
      _
    $region15: #{tpu_custom_call.1} parent=1 // pred_check_branch
      %62 = sbr.rel (0) target = $region17
    $region16: #{tpu_custom_call.1} parent=1 // pred_region
      %s64 = ssub.s32 16, 16
      %65 = vsyncadd [#allocation9], %s64
      %s67 = sshll.u32 [#allocation8], 4
      %s68 = int_to_ptr.vmem [resolvable:$true] %s67
      %70 = dma.hbm_to_vmem [thread:$0]  %s3, 16, %s68, [#allocation9]
    $region17: #{tpu_custom_call.1} parent=1 // pred_fallthru
      _
    // Predicated region
    $region18: #{tpu_custom_call.1} parent=1 // pred_check
      _
    $region19: #{tpu_custom_call.1} parent=1 // pred_check_branch
      %72 = sbr.rel (0) target = $region21
    $region20: #{tpu_custom_call.1} parent=1 // pred_region
      %s74 = ssub.s32 16, 16
      %75 = vsyncadd [#allocation9], %s74
      %s77 = sshll.u32 [#allocation10], 4
      %s78 = int_to_ptr.vmem [resolvable:$true] %s77
      %80 = dma.hbm_to_vmem [thread:$0]  %s4, 16, %s78, [#allocation9]
    $region21: #{tpu_custom_call.1} parent=1 // pred_fallthru
      _
    // Predicated region
    $region22: #{tpu_custom_call.1} parent=1 // pred_check
      _
    $region23: #{tpu_custom_call.1} parent=1 // pred_check_branch
      %82 = sbr.rel (0) target = $region25
    $region24: #{tpu_custom_call.1} parent=1 // pred_region
      %s84 = ssub.s32 16, 16
      %85 = vsyncadd [#allocation12], %s84
      %s87 = sshll.u32 [#allocation11], 4
      %s88 = int_to_ptr.vmem [resolvable:$true] %s87
      %90 = dma.hbm_to_vmem [thread:$0]  %s5, 16, %s88, [#allocation12]
    $region25: #{tpu_custom_call.1} parent=1 // pred_fallthru
      _
    // Predicated region
    $region26: #{tpu_custom_call.1} parent=1 // pred_check
      _
    $region27: #{tpu_custom_call.1} parent=1 // pred_check_branch
      %92 = sbr.rel (0) target = $region29
    $region28: #{tpu_custom_call.1} parent=1 // pred_region
      %s94 = ssub.s32 16, 16
      %95 = vsyncadd [#allocation12], %s94
      %s97 = sshll.u32 [#allocation13], 4
      %s98 = int_to_ptr.vmem [resolvable:$true] %s97
      %100 = dma.hbm_to_vmem [thread:$0]  %s6, 16, %s98, [#allocation12]
    $region29: #{tpu_custom_call.1} parent=1 // pred_fallthru
      _
    // Predicated region
    $region30: #{tpu_custom_call.1} parent=1 // pred_check
      _
    $region31: #{tpu_custom_call.1} parent=1 // pred_check_branch
      %102 = sbr.rel (0) target = $region33
    $region32: #{tpu_custom_call.1} parent=1 // pred_region
      %s104 = ssub.s32 256, 256
      %105 = vsyncadd [#allocation15], %s104
      %s106 = sshll.u32 [#allocation14], 4
      %s107 = int_to_ptr.vmem [resolvable:$true] %s106
      %112 = dma.hbm_to_vmem [thread:$0]  %s7, 256, %s107, [#allocation15], 64, 64, 4
    $region33: #{tpu_custom_call.1} parent=1 // pred_fallthru
      _
    // Predicated region
    $region34: #{tpu_custom_call.1} parent=1 // pred_check
      _
    $region35: #{tpu_custom_call.1} parent=1 // pred_check_branch
      %114 = sbr.rel (0) target = $region37
    $region36: #{tpu_custom_call.1} parent=1 // pred_region
      %s116 = ssub.s32 256, 256
      %117 = vsyncadd [#allocation15], %s116
      %s118 = sshll.u32 [#allocation16], 4
      %s119 = int_to_ptr.vmem [resolvable:$true] %s118
      %124 = dma.hbm_to_vmem [thread:$0]  %s8, 256, %s119, [#allocation15], 64, 64, 4
    $region37: #{tpu_custom_call.1} parent=1 // pred_fallthru
      _
    // Predicated region
    $region38: #{tpu_custom_call.1} parent=1 // pred_check
      _
    $region39: #{tpu_custom_call.1} parent=1 // pred_check_branch
      %126 = sbr.rel (0) target = $region41
    $region40: #{tpu_custom_call.1} parent=1 // pred_region
      _
    $region41: #{tpu_custom_call.1} parent=1 // pred_fallthru
      _
    // Predicated region
    $region42: #{tpu_custom_call.1} parent=1 // pred_check
      _
    $region43: #{tpu_custom_call.1} parent=1 // pred_check_branch
      %128 = sbr.rel (0) target = $region45
    $region44: #{tpu_custom_call.1} parent=1 // pred_region
      %129 = dma.done [#allocation3], 256
    $region45: #{tpu_custom_call.1} parent=1 // pred_fallthru
      _
    // Predicated region
    $region46: #{tpu_custom_call.1} parent=1 // pred_check
      _
    $region47: #{tpu_custom_call.1} parent=1 // pred_check_branch
      %131 = sbr.rel (0) target = $region49
    $region48: #{tpu_custom_call.1} parent=1 // pred_region
      %132 = dma.done [#allocation6], 256
    $region49: #{tpu_custom_call.1} parent=1 // pred_fallthru
      _
    // Predicated region
    $region50: #{tpu_custom_call.1} parent=1 // pred_check
      _
    $region51: #{tpu_custom_call.1} parent=1 // pred_check_branch
      %134 = sbr.rel (0) target = $region53
    $region52: #{tpu_custom_call.1} parent=1 // pred_region
      %135 = dma.done [#allocation6], 256
    $region53: #{tpu_custom_call.1} parent=1 // pred_fallthru
      _
    // Predicated region
    $region54: #{tpu_custom_call.1} parent=1 // pred_check
      _
    $region55: #{tpu_custom_call.1} parent=1 // pred_check_branch
      %137 = sbr.rel (0) target = $region57
    $region56: #{tpu_custom_call.1} parent=1 // pred_region
      %138 = dma.done [#allocation9], 16
    $region57: #{tpu_custom_call.1} parent=1 // pred_fallthru
      _
    // Predicated region
    $region58: #{tpu_custom_call.1} parent=1 // pred_check
      _
    $region59: #{tpu_custom_call.1} parent=1 // pred_check_branch
      %140 = sbr.rel (0) target = $region61
    $region60: #{tpu_custom_call.1} parent=1 // pred_region
      %141 = dma.done [#allocation9], 16
    $region61: #{tpu_custom_call.1} parent=1 // pred_fallthru
      _
    // Predicated region
    $region62: #{tpu_custom_call.1} parent=1 // pred_check
      _
    $region63: #{tpu_custom_call.1} parent=1 // pred_check_branch
      %143 = sbr.rel (0) target = $region65
    $region64: #{tpu_custom_call.1} parent=1 // pred_region
      %144 = dma.done [#allocation12], 16
    $region65: #{tpu_custom_call.1} parent=1 // pred_fallthru
      _
    // Predicated region
    $region66: #{tpu_custom_call.1} parent=1 // pred_check
      _
    $region67: #{tpu_custom_call.1} parent=1 // pred_check_branch
      %146 = sbr.rel (0) target = $region69
    $region68: #{tpu_custom_call.1} parent=1 // pred_region
      %147 = dma.done [#allocation12], 16
    $region69: #{tpu_custom_call.1} parent=1 // pred_fallthru
      _
    // Predicated region
    $region70: #{tpu_custom_call.1} parent=1 // pred_check
      _
    $region71: #{tpu_custom_call.1} parent=1 // pred_check_branch
      %149 = sbr.rel (0) target = $region73
    $region72: #{tpu_custom_call.1} parent=1 // pred_region
      %150 = dma.done [#allocation15], 256
    $region73: #{tpu_custom_call.1} parent=1 // pred_fallthru
      _
    // Predicated region
    $region74: #{tpu_custom_call.1} parent=1 // pred_check
      _
    $region75: #{tpu_custom_call.1} parent=1 // pred_check_branch
      %152 = sbr.rel (0) target = $region77
    $region76: #{tpu_custom_call.1} parent=1 // pred_region
      %153 = dma.done [#allocation15], 256
    $region77: #{tpu_custom_call.1} parent=1 // pred_fallthru
      _
    %v155 = vld [vmem:[#allocation2] sm:$0xff]
    %v156 = vld [vmem:[#allocation2 + $0x8] sm:$0xff]
    %v157 = vld [vmem:[#allocation8] sm:$0x1]
    %v158 = vld [vmem:[#allocation10] sm:$0x1]
    %vm159 = vcmask 261120
    %v160 = vsel %vm159, %v155, 0.0
    %161 = vadd.xlane.f32.xlu0 %v160
    %v162 = vpop.xlane.xlu0 %161
    %v163 = vsel %vm159, %v156, 0.0
    %164 = vadd.xlane.f32.xlu0 %v163
    %v165 = vpop.xlane.xlu0 %164
    %v166 = vrcp.pop 32.0
    %v167 = vmul.f32 %v162, %v166
    %v168 = vmul.f32 %v165, %v166
    %v169 = vsub.f32 %v155, %v167
    %v170 = vsub.f32 %v156, %v168
    %v171 = vmul.f32 %v169, %v169
    %v172 = vmul.f32 %v170, %v170
    %v173 = vsel %vm159, %v171, 0.0
    %174 = vadd.xlane.f32.xlu0 %v173
    %v175 = vpop.xlane.xlu0 %174
    %v176 = vsel %vm159, %v172, 0.0
    %177 = vadd.xlane.f32.xlu0 %v176
    %v178 = vpop.xlane.xlu0 %177
    %v179 = vmul.f32 %v175, %v166
    %v180 = vmul.f32 %v178, %v166
    %v181 = vadd.f32 %v179, 1e-05
    %v182 = vadd.f32 %v180, 1e-05
    %v183 = vrsqrt.pop %v181
    %v184 = vrsqrt.pop %v182
    %v185 = vmul.f32 %v169, %v183
    %v186 = vmul.f32 %v170, %v184
    %v188 = vlaneseq
    %v189 = vshrl.u32 %v188, 7
    %v190 = vsub.s32 0, %v189
    %v191 = vrot.slane %v157, %v190
    %v193 = vmul.f32 %v185, %v191
    %v194 = vmul.f32 %v186, %v191
    %v196 = vlaneseq
    %v197 = vshrl.u32 %v196, 7
    %v198 = vsub.s32 0, %v197
    %v199 = vrot.slane %v158, %v198
    %v201 = vadd.f32 %v193, %v199
    %v202 = vadd.f32 %v194, %v199
    %v203 = vpack.c.bf16 %v202, %v201
    %v204 = vld [vmem:[#allocation5] sm:$0xff]
    %v205 = vld [vmem:[#allocation5 + $0x8] sm:$0xff]
    %v206 = vsel %vm159, %v204, 0.0
    %207 = vadd.xlane.f32.xlu0 %v206
    %v208 = vpop.xlane.xlu0 %207
    %v209 = vsel %vm159, %v205, 0.0
    %210 = vadd.xlane.f32.xlu0 %v209
    %v211 = vpop.xlane.xlu0 %210
    %v212 = vmul.f32 %v208, %v166
    %v213 = vmul.f32 %v211, %v166
    %v214 = vsub.f32 %v204, %v212
    %v215 = vsub.f32 %v205, %v213
    %v216 = vmul.f32 %v214, %v214
    %v217 = vmul.f32 %v215, %v215
    %v218 = vsel %vm159, %v216, 0.0
    %219 = vadd.xlane.f32.xlu0 %v218
    %v220 = vpop.xlane.xlu0 %219
    %v221 = vsel %vm159, %v217, 0.0
    %222 = vadd.xlane.f32.xlu0 %v221
    %v223 = vpop.xlane.xlu0 %222
    %v224 = vmul.f32 %v220, %v166
    %v225 = vmul.f32 %v223, %v166
    %v226 = vadd.f32 %v224, 1e-05
    %v227 = vadd.f32 %v225, 1e-05
    %v228 = vrsqrt.pop %v226
    %v229 = vrsqrt.pop %v227
    %v230 = vmul.f32 %v214, %v228
    %v231 = vmul.f32 %v215, %v229
    %v232 = vmul.f32 %v230, %v191
    %v233 = vmul.f32 %v231, %v191
    %v234 = vadd.f32 %v232, %v199
    %v235 = vadd.f32 %v233, %v199
    %v236 = vpack.c.bf16 %v235, %v234
    %v237 = vld [vmem:[#allocation7] sm:$0xff]
    %v238 = vld [vmem:[#allocation7 + $0x8] sm:$0xff]
    %v239 = vld [vmem:[#allocation11] sm:$0x1]
    %v240 = vld [vmem:[#allocation13] sm:$0x1]
    %v241 = vsel %vm159, %v237, 0.0
    %242 = vadd.xlane.f32.xlu0 %v241
    %v243 = vpop.xlane.xlu0 %242
    %v244 = vsel %vm159, %v238, 0.0
    %245 = vadd.xlane.f32.xlu0 %v244
    %v246 = vpop.xlane.xlu0 %245
    %v247 = vmul.f32 %v243, %v166
    %v248 = vmul.f32 %v246, %v166
    %v249 = vsub.f32 %v237, %v247
    %v250 = vsub.f32 %v238, %v248
    %v251 = vmul.f32 %v249, %v249
    %v252 = vmul.f32 %v250, %v250
    %v253 = vsel %vm159, %v251, 0.0
    %254 = vadd.xlane.f32.xlu0 %v253
    %v255 = vpop.xlane.xlu0 %254
    %v256 = vsel %vm159, %v252, 0.0
    %257 = vadd.xlane.f32.xlu0 %v256
    %v258 = vpop.xlane.xlu0 %257
    %v259 = vmul.f32 %v255, %v166
    %v260 = vmul.f32 %v258, %v166
    %v261 = vadd.f32 %v259, 1e-05
    %v262 = vadd.f32 %v260, 1e-05
    %v263 = vrsqrt.pop %v261
    %v264 = vrsqrt.pop %v262
    %v265 = vmul.f32 %v249, %v263
    %v266 = vmul.f32 %v250, %v264
    %v268 = vlaneseq
    %v269 = vshrl.u32 %v268, 7
    %v270 = vsub.s32 0, %v269
    %v271 = vrot.slane %v239, %v270
    %v273 = vmul.f32 %v265, %v271
    %v274 = vmul.f32 %v266, %v271
    %v276 = vlaneseq
    %v277 = vshrl.u32 %v276, 7
    %v278 = vsub.s32 0, %v277
    %v279 = vrot.slane %v240, %v278
    %v281 = vadd.f32 %v273, %v279
    %v282 = vadd.f32 %v274, %v279
    %v283 = vpack.c.bf16 %v282, %v281
    %v284 = vld [vmem:[#allocation14] sm:$0xf]
    %v285 = vld [vmem:[#allocation14 + $0x4] sm:$0xf]
    %v286 = vld [vmem:[#allocation14 + $0x8] sm:$0xf]
    %v287 = vld [vmem:[#allocation14 + $0xc] sm:$0xf]
    %v292 = vunpack.c.l.b16 %v284
    %v293 = vunpack.c.l.b16 %v285
    %v294 = vunpack.c.l.b16 %v286
    %v295 = vunpack.c.l.b16 %v287
    %v296 = vpack.c.b16 %v293, %v292
    %v297 = vpack.c.b16 %v295, %v294
    %v301 = vsel %vm159, %v203, 0
    %303 = vmatprep.subr.bf16.mxu0 0
    %304 = vmatpush1.bf16.msra.mxu0 0
    %305 = vmatprep.subr.bf16.mxu0 0
    %306 = vmatpush1.bf16.msra.mxu0 0
    %307 = vmatprep.subr.bf16.mxu0 0
    %308 = vmatpush1.bf16.msra.mxu0 0
    %309 = vmatprep.subr.bf16.mxu0 0
    %310 = vmatpush1.bf16.msra.mxu0 0
    %311 = vmatprep.subr.bf16.mxu0 0
    %312 = vmatpush1.bf16.msra.mxu0 0
    %313 = vmatprep.subr.bf16.mxu0 0
    %314 = vmatpush1.bf16.msra.mxu0 0
    %315 = vmatprep.subr.bf16.mxu0 0
    %316 = vmatpush1.bf16.msra.mxu0 %v297
    %317 = vmatprep.subr.bf16.mxu0 0
    %318 = vmatpush1.bf16.msra.mxu0 %v296
    %319 = vmatprep.subr.bf16.mxu0 0
    %320 = vmatpush2.bf16.msra.mxu0 0
    %321 = vmatprep.subr.bf16.mxu0 0
    %322 = vmatpush2.bf16.msra.mxu0 0
    %323 = vmatprep.subr.bf16.mxu0 0
    %324 = vmatpush2.bf16.msra.mxu0 0
    %325 = vmatprep.subr.bf16.mxu0 0
    %326 = vmatpush2.bf16.msra.mxu0 0
    %327 = vmatprep.subr.bf16.mxu0 0
    %328 = vmatpush2.bf16.msra.mxu0 0
    %329 = vmatprep.subr.bf16.mxu0 0
    %330 = vmatpush2.bf16.msra.mxu0 0
    %331 = vmatprep.subr.bf16.mxu0 0
    %332 = vmatpush2.bf16.msra.mxu0 0
    %333 = vmatprep.subr.bf16.mxu0 0
    %334 = vmatpush2.bf16.msra.mxu0 0
    %335 = vmatprep.mubr.bf16.mxu0 0
    %336 = vmatmul.mubr.bf16.gmra.mxu0 %v301
    %v337 = vpop.f32.mrf.mxu0
    %v338 = vadd.f32 0.0, %v337
    %v339 = vpop.f32.mrf.mxu0
    %v340 = vpop.f32.mrf.mxu0
    %v341 = vadd.f32 0.0, %v340
    %v342 = vpop.f32.mrf.mxu0
    %343 = vdwg.mxu0
    %v344 = vpack.c.bf16 %v341, %v338
    %v346 = vunpack.c.l.b16 %v344
    %v347 = vunpack.c.h.b16 %v344
    %v348 = vpack.c.b16 %v346, %v346
    %v349 = vpack.c.b16 %v347, %v347
    %vm352 = vcmask 257024
    %353 = vst.msk [vmem:[#allocation17] sm:$0xf] %vm352, %v348
    %354 = vst.msk [vmem:[#allocation17 + $0x4] sm:$0xf] %vm352, %v349
    %v355 = vld [vmem:[#allocation16] sm:$0xf]
    %v356 = vld [vmem:[#allocation16 + $0x4] sm:$0xf]
    %v357 = vld [vmem:[#allocation16 + $0x8] sm:$0xf]
    %v358 = vld [vmem:[#allocation16 + $0xc] sm:$0xf]
    %v363 = vunpack.c.l.b16 %v355
    %v364 = vunpack.c.l.b16 %v356
    %v365 = vunpack.c.l.b16 %v357
    %v366 = vunpack.c.l.b16 %v358
    %v367 = vpack.c.b16 %v364, %v363
    %v368 = vpack.c.b16 %v366, %v365
    %v372 = vsel %vm159, %v236, 0
    %374 = vmatprep.subr.bf16.mxu0 0
    %375 = vmatpush1.bf16.msra.mxu0 0
    %376 = vmatprep.subr.bf16.mxu0 0
    %377 = vmatpush1.bf16.msra.mxu0 0
    %378 = vmatprep.subr.bf16.mxu0 0
    %379 = vmatpush1.bf16.msra.mxu0 0
    %380 = vmatprep.subr.bf16.mxu0 0
    %381 = vmatpush1.bf16.msra.mxu0 0
    %382 = vmatprep.subr.bf16.mxu0 0
    %383 = vmatpush1.bf16.msra.mxu0 0
    %384 = vmatprep.subr.bf16.mxu0 0
    %385 = vmatpush1.bf16.msra.mxu0 0
    %386 = vmatprep.subr.bf16.mxu0 0
    %387 = vmatpush1.bf16.msra.mxu0 %v368
    %388 = vmatprep.subr.bf16.mxu0 0
    %389 = vmatpush1.bf16.msra.mxu0 %v367
    %390 = vmatprep.subr.bf16.mxu0 0
    %391 = vmatpush2.bf16.msra.mxu0 0
    %392 = vmatprep.subr.bf16.mxu0 0
    %393 = vmatpush2.bf16.msra.mxu0 0
    %394 = vmatprep.subr.bf16.mxu0 0
    %395 = vmatpush2.bf16.msra.mxu0 0
    %396 = vmatprep.subr.bf16.mxu0 0
    %397 = vmatpush2.bf16.msra.mxu0 0
    %398 = vmatprep.subr.bf16.mxu0 0
    %399 = vmatpush2.bf16.msra.mxu0 0
    %400 = vmatprep.subr.bf16.mxu0 0
    %401 = vmatpush2.bf16.msra.mxu0 0
    %402 = vmatprep.subr.bf16.mxu0 0
    %403 = vmatpush2.bf16.msra.mxu0 0
    %404 = vmatprep.subr.bf16.mxu0 0
    %405 = vmatpush2.bf16.msra.mxu0 0
    %406 = vmatprep.mubr.bf16.mxu0 0
    %407 = vmatmul.mubr.bf16.gmra.mxu0 %v372
    %v408 = vpop.f32.mrf.mxu0
    %v409 = vadd.f32 0.0, %v408
    %v410 = vpop.f32.mrf.mxu0
    %v411 = vpop.f32.mrf.mxu0
    %v412 = vadd.f32 0.0, %v411
    %v413 = vpop.f32.mrf.mxu0
    %414 = vdwg.mxu0
    %v415 = vpack.c.bf16 %v412, %v409
    %v417 = vunpack.c.l.b16 %v415
    %v418 = vunpack.c.h.b16 %v415
    %v419 = vpack.c.b16 %v417, %v417
    %v420 = vpack.c.b16 %v418, %v418
    %423 = vst.msk [vmem:[#allocation18] sm:$0xf] %vm352, %v419
    %424 = vst.msk [vmem:[#allocation18 + $0x4] sm:$0xf] %vm352, %v420
    %v425 = vld [vmem:[%s9] sm:$0xf]
    %v426 = vld [vmem:[%s9 + $0x4] sm:$0xf]
    %v427 = vld [vmem:[%s9 + $0x8] sm:$0xf]
    %v428 = vld [vmem:[%s9 + $0xc] sm:$0xf]
    %v433 = vunpack.c.l.b16 %v425
    %v434 = vunpack.c.l.b16 %v426
    %v435 = vunpack.c.l.b16 %v427
    %v436 = vunpack.c.l.b16 %v428
    %v437 = vpack.c.b16 %v434, %v433
    %v438 = vpack.c.b16 %v436, %v435
    %v442 = vsel %vm159, %v283, 0
    %444 = vmatprep.subr.bf16.mxu0 0
    %445 = vmatpush1.bf16.msra.mxu0 0
    %446 = vmatprep.subr.bf16.mxu0 0
    %447 = vmatpush1.bf16.msra.mxu0 0
    %448 = vmatprep.subr.bf16.mxu0 0
    %449 = vmatpush1.bf16.msra.mxu0 0
    %450 = vmatprep.subr.bf16.mxu0 0
    %451 = vmatpush1.bf16.msra.mxu0 0
    %452 = vmatprep.subr.bf16.mxu0 0
    %453 = vmatpush1.bf16.msra.mxu0 0
    %454 = vmatprep.subr.bf16.mxu0 0
    %455 = vmatpush1.bf16.msra.mxu0 0
    %456 = vmatprep.subr.bf16.mxu0 0
    %457 = vmatpush1.bf16.msra.mxu0 %v438
    %458 = vmatprep.subr.bf16.mxu0 0
    %459 = vmatpush1.bf16.msra.mxu0 %v437
    %460 = vmatprep.subr.bf16.mxu0 0
    %461 = vmatpush2.bf16.msra.mxu0 0
    %462 = vmatprep.subr.bf16.mxu0 0
    %463 = vmatpush2.bf16.msra.mxu0 0
    %464 = vmatprep.subr.bf16.mxu0 0
    %465 = vmatpush2.bf16.msra.mxu0 0
    %466 = vmatprep.subr.bf16.mxu0 0
    %467 = vmatpush2.bf16.msra.mxu0 0
    %468 = vmatprep.subr.bf16.mxu0 0
    %469 = vmatpush2.bf16.msra.mxu0 0
    %470 = vmatprep.subr.bf16.mxu0 0
    %471 = vmatpush2.bf16.msra.mxu0 0
    %472 = vmatprep.subr.bf16.mxu0 0
    %473 = vmatpush2.bf16.msra.mxu0 0
    %474 = vmatprep.subr.bf16.mxu0 0
    %475 = vmatpush2.bf16.msra.mxu0 0
    %476 = vmatprep.mubr.bf16.mxu0 0
    %477 = vmatmul.mubr.bf16.gmra.mxu0 %v442
    %v478 = vpop.f32.mrf.mxu0
    %v479 = vadd.f32 0.0, %v478
    %v480 = vpop.f32.mrf.mxu0
    %v481 = vpop.f32.mrf.mxu0
    %v482 = vadd.f32 0.0, %v481
    %v483 = vpop.f32.mrf.mxu0
    %484 = vdwg.mxu0
    %v485 = vpack.c.bf16 %v482, %v479
    %v487 = vunpack.c.l.b16 %v485
    %v488 = vunpack.c.h.b16 %v485
    %v489 = vpack.c.b16 %v487, %v487
    %v490 = vpack.c.b16 %v488, %v488
    %493 = vst.msk [vmem:[#allocation20] sm:$0xf] %vm352, %v489
    %494 = vst.msk [vmem:[#allocation20 + $0x4] sm:$0xf] %vm352, %v490
    // Predicated region
    $region78: #{tpu_custom_call.1} parent=1 // pred_check
      _
    $region79: #{tpu_custom_call.1} parent=1 // pred_check_branch
      %496 = sbr.rel (0) target = $region81
    $region80: #{tpu_custom_call.1} parent=1 // pred_region
      %s498 = ssub.s32 128, 128
      %499 = vsyncadd [#allocation4], %s498
      %s500 = sshll.u32 [#allocation17], 4
      %s501 = int_to_ptr.vmem [resolvable:$true] %s500
      %506 = dma.vmem_to_hbm [thread:$0]  %s501, 128, %s10, [#allocation4], 64, 64, 4
    $region81: #{tpu_custom_call.1} parent=1 // pred_fallthru
      _
    // Predicated region
    $region82: #{tpu_custom_call.1} parent=1 // pred_check
      _
    $region83: #{tpu_custom_call.1} parent=1 // pred_check_branch
      %508 = sbr.rel (0) target = $region85
    $region84: #{tpu_custom_call.1} parent=1 // pred_region
      %s510 = ssub.s32 128, 128
      %511 = vsyncadd [#allocation19], %s510
      %s512 = sshll.u32 [#allocation18], 4
      %s513 = int_to_ptr.vmem [resolvable:$true] %s512
      %518 = dma.vmem_to_hbm [thread:$0]  %s513, 128, %s11, [#allocation19], 64, 64, 4
    $region85: #{tpu_custom_call.1} parent=1 // pred_fallthru
      _
    // Predicated region
    $region86: #{tpu_custom_call.1} parent=1 // pred_check
      _
    $region87: #{tpu_custom_call.1} parent=1 // pred_check_branch
      %520 = sbr.rel (0) target = $region89
    $region88: #{tpu_custom_call.1} parent=1 // pred_region
      %s522 = ssub.s32 128, 128
      %523 = vsyncadd [#allocation19], %s522
      %s524 = sshll.u32 [#allocation20], 4
      %s525 = int_to_ptr.vmem [resolvable:$true] %s524
      %530 = dma.vmem_to_hbm [thread:$0]  %s525, 128, %s12, [#allocation19], 64, 64, 4
    $region89: #{tpu_custom_call.1} parent=1 // pred_fallthru
      _
    // Predicated region
    $region90: #{tpu_custom_call.1} parent=1 // pred_check
      _
    $region91: #{tpu_custom_call.1} parent=1 // pred_check_branch
      %532 = sbr.rel (0) target = $region93
    $region92: #{tpu_custom_call.1} parent=1 // pred_region
      %533 = dma.done [#allocation4], 128
    $region93: #{tpu_custom_call.1} parent=1 // pred_fallthru
      _
    // Predicated region
    $region94: #{tpu_custom_call.1} parent=1 // pred_check
      _
    $region95: #{tpu_custom_call.1} parent=1 // pred_check_branch
      %535 = sbr.rel (0) target = $region97
    $region96: #{tpu_custom_call.1} parent=1 // pred_region
      %536 = dma.done [#allocation19], 128
    $region97: #{tpu_custom_call.1} parent=1 // pred_fallthru
      _
    // Predicated region
    $region98: #{tpu_custom_call.1} parent=1 // pred_check
      _
    $region99: #{tpu_custom_call.1} parent=1 // pred_check_branch
      %538 = sbr.rel (0) target = $region101
    $region100: #{tpu_custom_call.1} parent=1 // pred_region
      %539 = dma.done [#allocation19], 128
    $region101: #{tpu_custom_call.1} parent=1 // pred_fallthru
      _
    %540 = vsyncpa [#allocation3], 1
    %541 = vsyncpa [#allocation6], 1
    %542 = vsyncpa [#allocation9], 1
    %543 = vsyncpa [#allocation12], 1
    %544 = vsyncpa [#allocation15], 1
    %545 = vsyncpa [#allocation4], 1
    %546 = vsyncpa [#allocation19], 1

</llo_original>
